<compile_context>
chip_gen: v5e
topology: v5e:2x2
jax: 0.10.0
libtpu: 0.0.40
codegen_flags: <defaults>
</compile_context>

<pallas_src>
import jax
import jax.numpy as jnp
from jax import lax
from jax.experimental import pallas as pl
from jax.experimental.pallas import tpu as pltpu


def _round_up(x, m):
    return -(-x // m) * m


def _choose_tn(vocab_size, embedding_dim):
    """Lane-dense vocab tile.  Prefer large multiples of 256 (v6e/v7x MXU is
    2x256x256) while keeping the double-buffered weight + output tiles inside
    a ~24 MiB budget so everything fits v7x's 64 MiB VMEM with headroom."""
    v128 = _round_up(vocab_size, 128)
    budget = 24 << 20
    for tn in (2048, 1024, 512, 256, 128):
        if tn > v128:
            continue
        tile_bytes = 2 * embedding_dim * tn * 2 + 2 * 256 * tn * 4
        if tile_bytes <= budget:
            return tn
    return 128


def prepare_params(emb_table, pos_table, w, bias, *, weight_dtype=jnp.bfloat16):
    """One-time parameter preprocessing (keep OUT of the per-call hot path):
    transpose the Linear weight to (D, V), pad V up to the vocab tile, cast to
    bf16 for the MXU, and pad/reshape the bias.  NOTE: bf16 weights /
    activations with f32 accumulation deviate from PyTorch's f32 nn.Linear."""
    V, D = emb_table.shape
    S = pos_table.shape[0]
    assert pos_table.shape == (S, D)
    assert w.shape == (V, D) and bias.shape == (V,)

    TN = _choose_tn(V, D)
    V_pad = _round_up(V, TN)

    w_t = jnp.pad(jnp.asarray(w).T, ((0, 0), (0, V_pad - V))).astype(weight_dtype)
    bias2d = jnp.pad(jnp.asarray(bias), (0, V_pad - V)).reshape(1, V_pad)
    bias2d = bias2d.astype(jnp.float32)

    return dict(emb=jnp.asarray(emb_table), pos=jnp.asarray(pos_table),
                w_t=w_t, bias=bias2d, V=V, D=D, S=S, TN=TN, V_pad=V_pad)


def bow_forward(idx, params):
    """Forward pass of BagOfWordsLanguageModel.  idx: (B, S) int token ids.
    Returns (B, S, V) float32 logits."""
    emb, pos = params["emb"], params["pos"]
    w_t, bias = params["w_t"], params["bias"]
    V, D, S = params["V"], params["D"], params["S"]
    TN, V_pad = params["TN"], params["V_pad"]

    B, S_in = idx.shape
    assert S_in == S, f"idx seq_len {S_in} != positional table seq_len {S}"
    M = B * S

    # Row tile over the flattened B*S axis (full MXU height when M allows it).
    TM = min(256, _round_up(M, 8))
    M_pad = _round_up(M, TM)
    GC = 8                       # rows per in-flight DMA-gather chunk (8 | M_pad)
    NC = M_pad // GC

    # The gathered rows stay resident in VMEM for the whole grid.
    # TODO(synk): for very large B*S, fall back to a per-row-tile gather.
    assert M_pad * D * 6 <= (32 << 20), "resident h scratch would not fit VMEM"

    ids = jnp.pad(idx.reshape(-1).astype(jnp.int32), (0, M_pad - M))

    grid = (V_pad // TN, M_pad // TM)   # vocab OUTER, rows INNER -> weight streamed once

    def kernel(ids_ref, emb_hbm, pos_ref, w_ref, b_ref, out_ref,
               stage_ref, h_ref, sems):
        # ids_ref  : SMEM (M_pad,) int32          (scalar prefetch)
        # emb_hbm  : HBM  (V, D)                  (pl.ANY, row-gathered by DMA)
        # pos_ref  : VMEM (S, D)                  (fetched once, constant index)
        # w_ref    : VMEM (D, TN) bf16            (streamed once per vocab tile)
        # b_ref    : VMEM (1, TN) f32
        # out_ref  : VMEM (TM, TN) f32
        # stage_ref: VMEM (M_pad, D) f32 scratch  (gather staging, + pos add)
        # h_ref    : VMEM (M_pad, D) bf16 scratch (MXU LHS, cast once, persists)
        vj = pl.program_id(0)
        mi = pl.program_id(1)

        @pl.when((vj == 0) & (mi == 0))
        def _gather_all_rows():
            # One-shot DMA row gather of every token row (GC copies in flight).
            # Descriptors are built once per chunk and reused for start/wait;
            # all SMEM id reads happen before the first wait().
            def gather_chunk(c, carry):
                base = c * GC
                toks = [ids_ref[base + r] for r in range(GC)]
                cps = [pltpu.make_async_copy(
                           emb_hbm.at[pl.ds(toks[r], 1), :],
                           stage_ref.at[pl.ds(base + r, 1), :],
                           sems.at[r]) for r in range(GC)]
                for cp in cps:
                    cp.start()
                for cp in cps:
                    cp.wait()
                return carry
            lax.fori_loop(0, NC, gather_chunk, 0, unroll=NC <= 8)

            # Positional embedding: broadcast add of the (S, D) table onto each
            # batch's block of rows (pure VPU; rows past B*S are padding and
            # are sliced off by the wrapper), then a single f32->bf16 cast into
            # the persistent MXU operand.
            for b in range(B):
                sl = pl.ds(b * S, S)
                stage_ref[sl, :] = stage_ref[sl, :] + pos_ref[...]
            h_ref[...] = stage_ref[...].astype(h_ref.dtype)

        # (TM, D) @ (D, TN) on the MXU, bf16 inputs, f32 accumulation.
        row0 = pl.multiple_of(mi * TM, 8)
        h_tile = h_ref[pl.ds(row0, TM), :]
        acc = jnp.dot(h_tile, w_ref[...], preferred_element_type=jnp.float32)
        out_ref[...] = (acc + b_ref[...]).astype(out_ref.dtype)

    # Explicit VMEM budget: double-buffered weight/bias/pos/out tiles + the two
    # resident row scratches.  Critical on v7x (64 MiB physical VMEM).
    vmem_needed = (2 * D * TN * w_t.dtype.itemsize     # weight double buffer
                   + 2 * TM * TN * 4                   # output double buffer
                   + 2 * TN * 4                        # bias double buffer
                   + 2 * S * D * 4                     # pos double buffer
                   + M_pad * D * 4                     # f32 gather staging
                   + M_pad * D * 2)                    # bf16 h
    vmem_limit = int(min(max(2 * vmem_needed, 32 << 20), 64 << 20))

    flops = 2 * M_pad * D * V_pad
    bytes_accessed = (w_t.size * w_t.dtype.itemsize    # weight streamed once
                      + M_pad * V_pad * 4              # logits writeback
                      + M * D * emb.dtype.itemsize     # gathered embedding rows
                      + S * D * 4 + V_pad * 4)

    out = pl.pallas_call(
        kernel,
        out_shape=jax.ShapeDtypeStruct((M_pad, V_pad), jnp.float32),
        grid_spec=pltpu.PrefetchScalarGridSpec(
            num_scalar_prefetch=1,
            grid=grid,
            in_specs=[
                # Embedding table stays in HBM; rows are DMA-gathered in-kernel.
                pl.BlockSpec(memory_space=pl.ANY),
                # Positional table, constant block index -> fetched once.
                pl.BlockSpec((S, D), lambda vj, mi, ids: (0, 0)),
                # Weight column tile; index depends only on the OUTER axis, so
                # the re-fetch is elided across the inner row-tile steps.
                pl.BlockSpec((D, TN), lambda vj, mi, ids: (0, vj)),
                # Bias column tile.
                pl.BlockSpec((1, TN), lambda vj, mi, ids: (0, vj)),
            ],
            out_specs=pl.BlockSpec((TM, TN), lambda vj, mi, ids: (mi, vj)),
            scratch_shapes=[
                pltpu.VMEM((M_pad, D), jnp.float32),    # f32 gather staging (+pos)
                pltpu.VMEM((M_pad, D), w_t.dtype),      # bf16 h, cast once, persists
                pltpu.SemaphoreType.DMA((GC,)),
            ],
        ),
        compiler_params=pltpu.CompilerParams(
            # The h scratch persists across the whole grid and the gather runs
            # only at the very first step, so both axes must stay sequential.
            dimension_semantics=("arbitrary", "arbitrary"),
            vmem_limit_bytes=vmem_limit),
        cost_estimate=pl.CostEstimate(flops=flops, transcendentals=0,
                                      bytes_accessed=bytes_accessed),
    )(ids, emb, pos, w_t, bias)

    return out[:M, :V].reshape(B, S, V)


if __name__ == "__main__":
    # Small shapes consistent with the module (lane/MXU friendly).
    batch, seq_len, embedding_dim, vocab_size = 2, 8, 128, 256

    key = jax.random.PRNGKey(0)
    k_idx, k_emb, k_pos, k_w, k_b = jax.random.split(key, 5)

    emb_table = jax.random.normal(k_emb, (vocab_size, embedding_dim),
                                  dtype=jnp.float32)
    pos_table = jax.random.normal(k_pos, (seq_len, embedding_dim),
                                  dtype=jnp.float32)
    # PyTorch nn.Linear: weight (out, in) = (V, D), init U(-1/sqrt(D), 1/sqrt(D)).
    bound = 1.0 / (embedding_dim ** 0.5)
    w = jax.random.uniform(k_w, (vocab_size, embedding_dim),
                           minval=-bound, maxval=bound, dtype=jnp.float32)
    b = jax.random.uniform(k_b, (vocab_size,),
                           minval=-bound, maxval=bound, dtype=jnp.float32)
    idx = jax.random.randint(k_idx, (batch, seq_len), 0, vocab_size,
                             dtype=jnp.int32)

    params = prepare_params(emb_table, pos_table, w, b)   # one-time weight prep
    logits = bow_forward(idx, params)
    jax.block_until_ready(logits)

    # Pure-JAX reference with the same bf16 weight/activation casts
    # (f32 accumulation), so the comparison is apples-to-apples.
    h = emb_table[idx] + pos_table[None, :, :]
    ref = jnp.dot(h.astype(jnp.bfloat16).reshape(-1, embedding_dim),
                  w.T.astype(jnp.bfloat16),
                  preferred_element_type=jnp.float32)
    ref = ref.reshape(batch, seq_len, vocab_size) + b

    assert logits.shape == (batch, seq_len, vocab_size)
    max_err = float(jnp.max(jnp.abs(logits - ref)))
    assert jnp.allclose(logits, ref, atol=1e-2, rtol=1e-2), max_err

    # TODO(synk): generate() (softmax + torch.multinomial autoregressive loop)
    # is host-side sampling control flow, not part of the forward-pass kernel.
    print("KERNEL_OK")
</pallas_src>

<mosaic_0001>
module attributes {stable_mosaic.version = 11 : i64} {
  func.func @kernel(%arg0: i32, %arg1: i32, %arg2: memref<16xi32, #tpu.memory_space<smem>>, %arg3: memref<256x128xf32, #tpu.memory_space<any>>, %arg4: memref<8x128xf32, #tpu.memory_space<vmem>>, %arg5: memref<128x256xbf16, #tpu.memory_space<vmem>>, %arg6: memref<1x256xf32, #tpu.memory_space<vmem>>, %arg7: memref<16x256xf32, #tpu.memory_space<vmem>>, %arg8: memref<16x128xf32, #tpu.memory_space<vmem>>, %arg9: memref<16x128xbf16, #tpu.memory_space<vmem>>, %arg10: memref<8x!tpu.dma_semaphore, #tpu.memory_space<semaphore_mem>>) attributes {dimension_semantics = [#tpu.dimension_semantics<arbitrary>, #tpu.dimension_semantics<arbitrary>], iteration_bounds = array<i64: 1, 1>, scalar_prefetch = 1 : i64, scratch_operands = 3 : i64, tpu.core_type = #tpu.core_type<tc>, window_params = [{}, {pipeline_mode = #tpu.pipeline_mode<synchronous>, transform_indices = @transform_1, window_bounds = array<i64: 8, 128>}, {transform_indices = @transform_2, window_bounds = array<i64: 128, 256>}, {transform_indices = @transform_3, window_bounds = array<i64: 1, 256>}, {transform_indices = @transform_4, window_bounds = array<i64: 16, 256>}]} {
    %c0_i32 = arith.constant 0 : i32
    %0 = arith.cmpi eq, %arg0, %c0_i32 : i32
    %c0_i32_0 = arith.constant 0 : i32
    %1 = arith.cmpi eq, %arg1, %c0_i32_0 : i32
    %2 = arith.andi %0, %1 : i1
    %3 = arith.extui %2 : i1 to i32
    %c0_i32_1 = arith.constant 0 : i32
    %4 = arith.cmpi ne, %3, %c0_i32_1 : i32
    scf.if %4 {
      %c0_i32_8 = arith.constant 0 : i32
      %c8_i32 = arith.constant 8 : i32
      %15 = arith.muli %c0_i32_8, %c8_i32 : i32
      %c0_i32_9 = arith.constant 0 : i32
      %16 = arith.addi %15, %c0_i32_9 : i32
      %17 = arith.index_cast %16 : i32 to index
      %18 = memref.load %arg2[%17] : memref<16xi32, #tpu.memory_space<smem>>
      %c1_i32 = arith.constant 1 : i32
      %19 = arith.addi %15, %c1_i32 : i32
      %20 = arith.index_cast %19 : i32 to index
      %21 = memref.load %arg2[%20] : memref<16xi32, #tpu.memory_space<smem>>
      %c2_i32 = arith.constant 2 : i32
      %22 = arith.addi %15, %c2_i32 : i32
      %23 = arith.index_cast %22 : i32 to index
      %24 = memref.load %arg2[%23] : memref<16xi32, #tpu.memory_space<smem>>
      %c3_i32 = arith.constant 3 : i32
      %25 = arith.addi %15, %c3_i32 : i32
      %26 = arith.index_cast %25 : i32 to index
      %27 = memref.load %arg2[%26] : memref<16xi32, #tpu.memory_space<smem>>
      %c4_i32 = arith.constant 4 : i32
      %28 = arith.addi %15, %c4_i32 : i32
      %29 = arith.index_cast %28 : i32 to index
      %30 = memref.load %arg2[%29] : memref<16xi32, #tpu.memory_space<smem>>
      %c5_i32 = arith.constant 5 : i32
      %31 = arith.addi %15, %c5_i32 : i32
      %32 = arith.index_cast %31 : i32 to index
      %33 = memref.load %arg2[%32] : memref<16xi32, #tpu.memory_space<smem>>
      %c6_i32 = arith.constant 6 : i32
      %34 = arith.addi %15, %c6_i32 : i32
      %35 = arith.index_cast %34 : i32 to index
      %36 = memref.load %arg2[%35] : memref<16xi32, #tpu.memory_space<smem>>
      %c7_i32 = arith.constant 7 : i32
      %37 = arith.addi %15, %c7_i32 : i32
      %38 = arith.index_cast %37 : i32 to index
      %39 = memref.load %arg2[%38] : memref<16xi32, #tpu.memory_space<smem>>
      %c0_i32_10 = arith.constant 0 : i32
      %40 = arith.addi %15, %c0_i32_10 : i32
      %c1_i32_11 = arith.constant 1 : i32
      %41 = arith.addi %15, %c1_i32_11 : i32
      %c2_i32_12 = arith.constant 2 : i32
      %42 = arith.addi %15, %c2_i32_12 : i32
      %c3_i32_13 = arith.constant 3 : i32
      %43 = arith.addi %15, %c3_i32_13 : i32
      %c4_i32_14 = arith.constant 4 : i32
      %44 = arith.addi %15, %c4_i32_14 : i32
      %c5_i32_15 = arith.constant 5 : i32
      %45 = arith.addi %15, %c5_i32_15 : i32
      %c6_i32_16 = arith.constant 6 : i32
      %46 = arith.addi %15, %c6_i32_16 : i32
      %c7_i32_17 = arith.constant 7 : i32
      %47 = arith.addi %15, %c7_i32_17 : i32
      %c0_i32_18 = arith.constant 0 : i32
      %c0_i32_19 = arith.constant 0 : i32
      %48 = tpu.memref_slice %arg3[%18, %c0_i32_19] : memref<256x128xf32, #tpu.memory_space<any>> -> memref<1x128xf32, #tpu.memory_space<any>>
      %c0_i32_20 = arith.constant 0 : i32
      %49 = tpu.memref_slice %arg8[%40, %c0_i32_20] : memref<16x128xf32, #tpu.memory_space<vmem>> -> memref<1x128xf32, #tpu.memory_space<vmem>>
      %50 = tpu.memref_slice %arg10[%c0_i32_18] : memref<8x!tpu.dma_semaphore, #tpu.memory_space<semaphore_mem>> -> memref<1x!tpu.dma_semaphore, #tpu.memory_space<semaphore_mem>>
      %51 = tpu.memref_squeeze %50 : memref<1x!tpu.dma_semaphore, #tpu.memory_space<semaphore_mem>> -> memref<!tpu.dma_semaphore, #tpu.memory_space<semaphore_mem>>
      tpu.enqueue_dma source(%48 : memref<1x128xf32, #tpu.memory_space<any>>) target(%49 : memref<1x128xf32, #tpu.memory_space<vmem>>) target_semaphore(%51 : memref<!tpu.dma_semaphore, #tpu.memory_space<semaphore_mem>>)
      %c1_i32_21 = arith.constant 1 : i32
      %c0_i32_22 = arith.constant 0 : i32
      %52 = tpu.memref_slice %arg3[%21, %c0_i32_22] : memref<256x128xf32, #tpu.memory_space<any>> -> memref<1x128xf32, #tpu.memory_space<any>>
      %c0_i32_23 = arith.constant 0 : i32
      %53 = tpu.memref_slice %arg8[%41, %c0_i32_23] : memref<16x128xf32, #tpu.memory_space<vmem>> -> memref<1x128xf32, #tpu.memory_space<vmem>>
      %54 = tpu.memref_slice %arg10[%c1_i32_21] : memref<8x!tpu.dma_semaphore, #tpu.memory_space<semaphore_mem>> -> memref<1x!tpu.dma_semaphore, #tpu.memory_space<semaphore_mem>>
      %55 = tpu.memref_squeeze %54 : memref<1x!tpu.dma_semaphore, #tpu.memory_space<semaphore_mem>> -> memref<!tpu.dma_semaphore, #tpu.memory_space<semaphore_mem>>
      tpu.enqueue_dma source(%52 : memref<1x128xf32, #tpu.memory_space<any>>) target(%53 : memref<1x128xf32, #tpu.memory_space<vmem>>) target_semaphore(%55 : memref<!tpu.dma_semaphore, #tpu.memory_space<semaphore_mem>>)
      %c2_i32_24 = arith.constant 2 : i32
      %c0_i32_25 = arith.constant 0 : i32
      %56 = tpu.memref_slice %arg3[%24, %c0_i32_25] : memref<256x128xf32, #tpu.memory_space<any>> -> memref<1x128xf32, #tpu.memory_space<any>>
      %c0_i32_26 = arith.constant 0 : i32
      %57 = tpu.memref_slice %arg8[%42, %c0_i32_26] : memref<16x128xf32, #tpu.memory_space<vmem>> -> memref<1x128xf32, #tpu.memory_space<vmem>>
      %58 = tpu.memref_slice %arg10[%c2_i32_24] : memref<8x!tpu.dma_semaphore, #tpu.memory_space<semaphore_mem>> -> memref<1x!tpu.dma_semaphore, #tpu.memory_space<semaphore_mem>>
      %59 = tpu.memref_squeeze %58 : memref<1x!tpu.dma_semaphore, #tpu.memory_space<semaphore_mem>> -> memref<!tpu.dma_semaphore, #tpu.memory_space<semaphore_mem>>
      tpu.enqueue_dma source(%56 : memref<1x128xf32, #tpu.memory_space<any>>) target(%57 : memref<1x128xf32, #tpu.memory_space<vmem>>) target_semaphore(%59 : memref<!tpu.dma_semaphore, #tpu.memory_space<semaphore_mem>>)
      %c3_i32_27 = arith.constant 3 : i32
      %c0_i32_28 = arith.constant 0 : i32
      %60 = tpu.memref_slice %arg3[%27, %c0_i32_28] : memref<256x128xf32, #tpu.memory_space<any>> -> memref<1x128xf32, #tpu.memory_space<any>>
      %c0_i32_29 = arith.constant 0 : i32
      %61 = tpu.memref_slice %arg8[%43, %c0_i32_29] : memref<16x128xf32, #tpu.memory_space<vmem>> -> memref<1x128xf32, #tpu.memory_space<vmem>>
      %62 = tpu.memref_slice %arg10[%c3_i32_27] : memref<8x!tpu.dma_semaphore, #tpu.memory_space<semaphore_mem>> -> memref<1x!tpu.dma_semaphore, #tpu.memory_space<semaphore_mem>>
      %63 = tpu.memref_squeeze %62 : memref<1x!tpu.dma_semaphore, #tpu.memory_space<semaphore_mem>> -> memref<!tpu.dma_semaphore, #tpu.memory_space<semaphore_mem>>
      tpu.enqueue_dma source(%60 : memref<1x128xf32, #tpu.memory_space<any>>) target(%61 : memref<1x128xf32, #tpu.memory_space<vmem>>) target_semaphore(%63 : memref<!tpu.dma_semaphore, #tpu.memory_space<semaphore_mem>>)
      %c4_i32_30 = arith.constant 4 : i32
      %c0_i32_31 = arith.constant 0 : i32
      %64 = tpu.memref_slice %arg3[%30, %c0_i32_31] : memref<256x128xf32, #tpu.memory_space<any>> -> memref<1x128xf32, #tpu.memory_space<any>>
      %c0_i32_32 = arith.constant 0 : i32
      %65 = tpu.memref_slice %arg8[%44, %c0_i32_32] : memref<16x128xf32, #tpu.memory_space<vmem>> -> memref<1x128xf32, #tpu.memory_space<vmem>>
      %66 = tpu.memref_slice %arg10[%c4_i32_30] : memref<8x!tpu.dma_semaphore, #tpu.memory_space<semaphore_mem>> -> memref<1x!tpu.dma_semaphore, #tpu.memory_space<semaphore_mem>>
      %67 = tpu.memref_squeeze %66 : memref<1x!tpu.dma_semaphore, #tpu.memory_space<semaphore_mem>> -> memref<!tpu.dma_semaphore, #tpu.memory_space<semaphore_mem>>
      tpu.enqueue_dma source(%64 : memref<1x128xf32, #tpu.memory_space<any>>) target(%65 : memref<1x128xf32, #tpu.memory_space<vmem>>) target_semaphore(%67 : memref<!tpu.dma_semaphore, #tpu.memory_space<semaphore_mem>>)
      %c5_i32_33 = arith.constant 5 : i32
      %c0_i32_34 = arith.constant 0 : i32
      %68 = tpu.memref_slice %arg3[%33, %c0_i32_34] : memref<256x128xf32, #tpu.memory_space<any>> -> memref<1x128xf32, #tpu.memory_space<any>>
      %c0_i32_35 = arith.constant 0 : i32
      %69 = tpu.memref_slice %arg8[%45, %c0_i32_35] : memref<16x128xf32, #tpu.memory_space<vmem>> -> memref<1x128xf32, #tpu.memory_space<vmem>>
      %70 = tpu.memref_slice %arg10[%c5_i32_33] : memref<8x!tpu.dma_semaphore, #tpu.memory_space<semaphore_mem>> -> memref<1x!tpu.dma_semaphore, #tpu.memory_space<semaphore_mem>>
      %71 = tpu.memref_squeeze %70 : memref<1x!tpu.dma_semaphore, #tpu.memory_space<semaphore_mem>> -> memref<!tpu.dma_semaphore, #tpu.memory_space<semaphore_mem>>
      tpu.enqueue_dma source(%68 : memref<1x128xf32, #tpu.memory_space<any>>) target(%69 : memref<1x128xf32, #tpu.memory_space<vmem>>) target_semaphore(%71 : memref<!tpu.dma_semaphore, #tpu.memory_space<semaphore_mem>>)
      %c6_i32_36 = arith.constant 6 : i32
      %c0_i32_37 = arith.constant 0 : i32
      %72 = tpu.memref_slice %arg3[%36, %c0_i32_37] : memref<256x128xf32, #tpu.memory_space<any>> -> memref<1x128xf32, #tpu.memory_space<any>>
      %c0_i32_38 = arith.constant 0 : i32
      %73 = tpu.memref_slice %arg8[%46, %c0_i32_38] : memref<16x128xf32, #tpu.memory_space<vmem>> -> memref<1x128xf32, #tpu.memory_space<vmem>>
      %74 = tpu.memref_slice %arg10[%c6_i32_36] : memref<8x!tpu.dma_semaphore, #tpu.memory_space<semaphore_mem>> -> memref<1x!tpu.dma_semaphore, #tpu.memory_space<semaphore_mem>>
      %75 = tpu.memref_squeeze %74 : memref<1x!tpu.dma_semaphore, #tpu.memory_space<semaphore_mem>> -> memref<!tpu.dma_semaphore, #tpu.memory_space<semaphore_mem>>
      tpu.enqueue_dma source(%72 : memref<1x128xf32, #tpu.memory_space<any>>) target(%73 : memref<1x128xf32, #tpu.memory_space<vmem>>) target_semaphore(%75 : memref<!tpu.dma_semaphore, #tpu.memory_space<semaphore_mem>>)
      %c7_i32_39 = arith.constant 7 : i32
      %c0_i32_40 = arith.constant 0 : i32
      %76 = tpu.memref_slice %arg3[%39, %c0_i32_40] : memref<256x128xf32, #tpu.memory_space<any>> -> memref<1x128xf32, #tpu.memory_space<any>>
      %c0_i32_41 = arith.constant 0 : i32
      %77 = tpu.memref_slice %arg8[%47, %c0_i32_41] : memref<16x128xf32, #tpu.memory_space<vmem>> -> memref<1x128xf32, #tpu.memory_space<vmem>>
      %78 = tpu.memref_slice %arg10[%c7_i32_39] : memref<8x!tpu.dma_semaphore, #tpu.memory_space<semaphore_mem>> -> memref<1x!tpu.dma_semaphore, #tpu.memory_space<semaphore_mem>>
      %79 = tpu.memref_squeeze %78 : memref<1x!tpu.dma_semaphore, #tpu.memory_space<semaphore_mem>> -> memref<!tpu.dma_semaphore, #tpu.memory_space<semaphore_mem>>
      tpu.enqueue_dma source(%76 : memref<1x128xf32, #tpu.memory_space<any>>) target(%77 : memref<1x128xf32, #tpu.memory_space<vmem>>) target_semaphore(%79 : memref<!tpu.dma_semaphore, #tpu.memory_space<semaphore_mem>>)
      %c0_i32_42 = arith.constant 0 : i32
      %c0_i32_43 = arith.constant 0 : i32
      %80 = tpu.memref_slice %arg3[%18, %c0_i32_43] : memref<256x128xf32, #tpu.memory_space<any>> -> memref<1x128xf32, #tpu.memory_space<any>>
      %c0_i32_44 = arith.constant 0 : i32
      %81 = tpu.memref_slice %arg8[%40, %c0_i32_44] : memref<16x128xf32, #tpu.memory_space<vmem>> -> memref<1x128xf32, #tpu.memory_space<vmem>>
      %82 = tpu.memref_slice %arg10[%c0_i32_42] : memref<8x!tpu.dma_semaphore, #tpu.memory_space<semaphore_mem>> -> memref<1x!tpu.dma_semaphore, #tpu.memory_space<semaphore_mem>>
      %83 = tpu.memref_squeeze %82 : memref<1x!tpu.dma_semaphore, #tpu.memory_space<semaphore_mem>> -> memref<!tpu.dma_semaphore, #tpu.memory_space<semaphore_mem>>
      tpu.wait_dma2 semaphore(%83 : memref<!tpu.dma_semaphore, #tpu.memory_space<semaphore_mem>>) src(%80 : memref<1x128xf32, #tpu.memory_space<any>>) dst(%81 : memref<1x128xf32, #tpu.memory_space<vmem>>)
      %c1_i32_45 = arith.constant 1 : i32
      %c0_i32_46 = arith.constant 0 : i32
      %84 = tpu.memref_slice %arg3[%21, %c0_i32_46] : memref<256x128xf32, #tpu.memory_space<any>> -> memref<1x128xf32, #tpu.memory_space<any>>
      %c0_i32_47 = arith.constant 0 : i32
      %85 = tpu.memref_slice %arg8[%41, %c0_i32_47] : memref<16x128xf32, #tpu.memory_space<vmem>> -> memref<1x128xf32, #tpu.memory_space<vmem>>
      %86 = tpu.memref_slice %arg10[%c1_i32_45] : memref<8x!tpu.dma_semaphore, #tpu.memory_space<semaphore_mem>> -> memref<1x!tpu.dma_semaphore, #tpu.memory_space<semaphore_mem>>
      %87 = tpu.memref_squeeze %86 : memref<1x!tpu.dma_semaphore, #tpu.memory_space<semaphore_mem>> -> memref<!tpu.dma_semaphore, #tpu.memory_space<semaphore_mem>>
      tpu.wait_dma2 semaphore(%87 : memref<!tpu.dma_semaphore, #tpu.memory_space<semaphore_mem>>) src(%84 : memref<1x128xf32, #tpu.memory_space<any>>) dst(%85 : memref<1x128xf32, #tpu.memory_space<vmem>>)
      %c2_i32_48 = arith.constant 2 : i32
      %c0_i32_49 = arith.constant 0 : i32
      %88 = tpu.memref_slice %arg3[%24, %c0_i32_49] : memref<256x128xf32, #tpu.memory_space<any>> -> memref<1x128xf32, #tpu.memory_space<any>>
      %c0_i32_50 = arith.constant 0 : i32
      %89 = tpu.memref_slice %arg8[%42, %c0_i32_50] : memref<16x128xf32, #tpu.memory_space<vmem>> -> memref<1x128xf32, #tpu.memory_space<vmem>>
      %90 = tpu.memref_slice %arg10[%c2_i32_48] : memref<8x!tpu.dma_semaphore, #tpu.memory_space<semaphore_mem>> -> memref<1x!tpu.dma_semaphore, #tpu.memory_space<semaphore_mem>>
      %91 = tpu.memref_squeeze %90 : memref<1x!tpu.dma_semaphore, #tpu.memory_space<semaphore_mem>> -> memref<!tpu.dma_semaphore, #tpu.memory_space<semaphore_mem>>
      tpu.wait_dma2 semaphore(%91 : memref<!tpu.dma_semaphore, #tpu.memory_space<semaphore_mem>>) src(%88 : memref<1x128xf32, #tpu.memory_space<any>>) dst(%89 : memref<1x128xf32, #tpu.memory_space<vmem>>)
      %c3_i32_51 = arith.constant 3 : i32
      %c0_i32_52 = arith.constant 0 : i32
      %92 = tpu.memref_slice %arg3[%27, %c0_i32_52] : memref<256x128xf32, #tpu.memory_space<any>> -> memref<1x128xf32, #tpu.memory_space<any>>
      %c0_i32_53 = arith.constant 0 : i32
      %93 = tpu.memref_slice %arg8[%43, %c0_i32_53] : memref<16x128xf32, #tpu.memory_space<vmem>> -> memref<1x128xf32, #tpu.memory_space<vmem>>
      %94 = tpu.memref_slice %arg10[%c3_i32_51] : memref<8x!tpu.dma_semaphore, #tpu.memory_space<semaphore_mem>> -> memref<1x!tpu.dma_semaphore, #tpu.memory_space<semaphore_mem>>
      %95 = tpu.memref_squeeze %94 : memref<1x!tpu.dma_semaphore, #tpu.memory_space<semaphore_mem>> -> memref<!tpu.dma_semaphore, #tpu.memory_space<semaphore_mem>>
      tpu.wait_dma2 semaphore(%95 : memref<!tpu.dma_semaphore, #tpu.memory_space<semaphore_mem>>) src(%92 : memref<1x128xf32, #tpu.memory_space<any>>) dst(%93 : memref<1x128xf32, #tpu.memory_space<vmem>>)
      %c4_i32_54 = arith.constant 4 : i32
      %c0_i32_55 = arith.constant 0 : i32
      %96 = tpu.memref_slice %arg3[%30, %c0_i32_55] : memref<256x128xf32, #tpu.memory_space<any>> -> memref<1x128xf32, #tpu.memory_space<any>>
      %c0_i32_56 = arith.constant 0 : i32
      %97 = tpu.memref_slice %arg8[%44, %c0_i32_56] : memref<16x128xf32, #tpu.memory_space<vmem>> -> memref<1x128xf32, #tpu.memory_space<vmem>>
      %98 = tpu.memref_slice %arg10[%c4_i32_54] : memref<8x!tpu.dma_semaphore, #tpu.memory_space<semaphore_mem>> -> memref<1x!tpu.dma_semaphore, #tpu.memory_space<semaphore_mem>>
      %99 = tpu.memref_squeeze %98 : memref<1x!tpu.dma_semaphore, #tpu.memory_space<semaphore_mem>> -> memref<!tpu.dma_semaphore, #tpu.memory_space<semaphore_mem>>
      tpu.wait_dma2 semaphore(%99 : memref<!tpu.dma_semaphore, #tpu.memory_space<semaphore_mem>>) src(%96 : memref<1x128xf32, #tpu.memory_space<any>>) dst(%97 : memref<1x128xf32, #tpu.memory_space<vmem>>)
      %c5_i32_57 = arith.constant 5 : i32
      %c0_i32_58 = arith.constant 0 : i32
      %100 = tpu.memref_slice %arg3[%33, %c0_i32_58] : memref<256x128xf32, #tpu.memory_space<any>> -> memref<1x128xf32, #tpu.memory_space<any>>
      %c0_i32_59 = arith.constant 0 : i32
      %101 = tpu.memref_slice %arg8[%45, %c0_i32_59] : memref<16x128xf32, #tpu.memory_space<vmem>> -> memref<1x128xf32, #tpu.memory_space<vmem>>
      %102 = tpu.memref_slice %arg10[%c5_i32_57] : memref<8x!tpu.dma_semaphore, #tpu.memory_space<semaphore_mem>> -> memref<1x!tpu.dma_semaphore, #tpu.memory_space<semaphore_mem>>
      %103 = tpu.memref_squeeze %102 : memref<1x!tpu.dma_semaphore, #tpu.memory_space<semaphore_mem>> -> memref<!tpu.dma_semaphore, #tpu.memory_space<semaphore_mem>>
      tpu.wait_dma2 semaphore(%103 : memref<!tpu.dma_semaphore, #tpu.memory_space<semaphore_mem>>) src(%100 : memref<1x128xf32, #tpu.memory_space<any>>) dst(%101 : memref<1x128xf32, #tpu.memory_space<vmem>>)
      %c6_i32_60 = arith.constant 6 : i32
      %c0_i32_61 = arith.constant 0 : i32
      %104 = tpu.memref_slice %arg3[%36, %c0_i32_61] : memref<256x128xf32, #tpu.memory_space<any>> -> memref<1x128xf32, #tpu.memory_space<any>>
      %c0_i32_62 = arith.constant 0 : i32
      %105 = tpu.memref_slice %arg8[%46, %c0_i32_62] : memref<16x128xf32, #tpu.memory_space<vmem>> -> memref<1x128xf32, #tpu.memory_space<vmem>>
      %106 = tpu.memref_slice %arg10[%c6_i32_60] : memref<8x!tpu.dma_semaphore, #tpu.memory_space<semaphore_mem>> -> memref<1x!tpu.dma_semaphore, #tpu.memory_space<semaphore_mem>>
      %107 = tpu.memref_squeeze %106 : memref<1x!tpu.dma_semaphore, #tpu.memory_space<semaphore_mem>> -> memref<!tpu.dma_semaphore, #tpu.memory_space<semaphore_mem>>
      tpu.wait_dma2 semaphore(%107 : memref<!tpu.dma_semaphore, #tpu.memory_space<semaphore_mem>>) src(%104 : memref<1x128xf32, #tpu.memory_space<any>>) dst(%105 : memref<1x128xf32, #tpu.memory_space<vmem>>)
      %c7_i32_63 = arith.constant 7 : i32
      %c0_i32_64 = arith.constant 0 : i32
      %108 = tpu.memref_slice %arg3[%39, %c0_i32_64] : memref<256x128xf32, #tpu.memory_space<any>> -> memref<1x128xf32, #tpu.memory_space<any>>
      %c0_i32_65 = arith.constant 0 : i32
      %109 = tpu.memref_slice %arg8[%47, %c0_i32_65] : memref<16x128xf32, #tpu.memory_space<vmem>> -> memref<1x128xf32, #tpu.memory_space<vmem>>
      %110 = tpu.memref_slice %arg10[%c7_i32_63] : memref<8x!tpu.dma_semaphore, #tpu.memory_space<semaphore_mem>> -> memref<1x!tpu.dma_semaphore, #tpu.memory_space<semaphore_mem>>
      %111 = tpu.memref_squeeze %110 : memref<1x!tpu.dma_semaphore, #tpu.memory_space<semaphore_mem>> -> memref<!tpu.dma_semaphore, #tpu.memory_space<semaphore_mem>>
      tpu.wait_dma2 semaphore(%111 : memref<!tpu.dma_semaphore, #tpu.memory_space<semaphore_mem>>) src(%108 : memref<1x128xf32, #tpu.memory_space<any>>) dst(%109 : memref<1x128xf32, #tpu.memory_space<vmem>>)
      %c1_i32_66 = arith.constant 1 : i32
      %c8_i32_67 = arith.constant 8 : i32
      %112 = arith.muli %c1_i32_66, %c8_i32_67 : i32
      %c0_i32_68 = arith.constant 0 : i32
      %113 = arith.addi %112, %c0_i32_68 : i32
      %114 = arith.index_cast %113 : i32 to index
      %115 = memref.load %arg2[%114] : memref<16xi32, #tpu.memory_space<smem>>
      %c1_i32_69 = arith.constant 1 : i32
      %116 = arith.addi %112, %c1_i32_69 : i32
      %117 = arith.index_cast %116 : i32 to index
      %118 = memref.load %arg2[%117] : memref<16xi32, #tpu.memory_space<smem>>
      %c2_i32_70 = arith.constant 2 : i32
      %119 = arith.addi %112, %c2_i32_70 : i32
      %120 = arith.index_cast %119 : i32 to index
      %121 = memref.load %arg2[%120] : memref<16xi32, #tpu.memory_space<smem>>
      %c3_i32_71 = arith.constant 3 : i32
      %122 = arith.addi %112, %c3_i32_71 : i32
      %123 = arith.index_cast %122 : i32 to index
      %124 = memref.load %arg2[%123] : memref<16xi32, #tpu.memory_space<smem>>
      %c4_i32_72 = arith.constant 4 : i32
      %125 = arith.addi %112, %c4_i32_72 : i32
      %126 = arith.index_cast %125 : i32 to index
      %127 = memref.load %arg2[%126] : memref<16xi32, #tpu.memory_space<smem>>
      %c5_i32_73 = arith.constant 5 : i32
      %128 = arith.addi %112, %c5_i32_73 : i32
      %129 = arith.index_cast %128 : i32 to index
      %130 = memref.load %arg2[%129] : memref<16xi32, #tpu.memory_space<smem>>
      %c6_i32_74 = arith.constant 6 : i32
      %131 = arith.addi %112, %c6_i32_74 : i32
      %132 = arith.index_cast %131 : i32 to index
      %133 = memref.load %arg2[%132] : memref<16xi32, #tpu.memory_space<smem>>
      %c7_i32_75 = arith.constant 7 : i32
      %134 = arith.addi %112, %c7_i32_75 : i32
      %135 = arith.index_cast %134 : i32 to index
      %136 = memref.load %arg2[%135] : memref<16xi32, #tpu.memory_space<smem>>
      %c0_i32_76 = arith.constant 0 : i32
      %137 = arith.addi %112, %c0_i32_76 : i32
      %c1_i32_77 = arith.constant 1 : i32
      %138 = arith.addi %112, %c1_i32_77 : i32
      %c2_i32_78 = arith.constant 2 : i32
      %139 = arith.addi %112, %c2_i32_78 : i32
      %c3_i32_79 = arith.constant 3 : i32
      %140 = arith.addi %112, %c3_i32_79 : i32
      %c4_i32_80 = arith.constant 4 : i32
      %141 = arith.addi %112, %c4_i32_80 : i32
      %c5_i32_81 = arith.constant 5 : i32
      %142 = arith.addi %112, %c5_i32_81 : i32
      %c6_i32_82 = arith.constant 6 : i32
      %143 = arith.addi %112, %c6_i32_82 : i32
      %c7_i32_83 = arith.constant 7 : i32
      %144 = arith.addi %112, %c7_i32_83 : i32
      %c0_i32_84 = arith.constant 0 : i32
      %c0_i32_85 = arith.constant 0 : i32
      %145 = tpu.memref_slice %arg3[%115, %c0_i32_85] : memref<256x128xf32, #tpu.memory_space<any>> -> memref<1x128xf32, #tpu.memory_space<any>>
      %c0_i32_86 = arith.constant 0 : i32
      %146 = tpu.memref_slice %arg8[%137, %c0_i32_86] : memref<16x128xf32, #tpu.memory_space<vmem>> -> memref<1x128xf32, #tpu.memory_space<vmem>>
      %147 = tpu.memref_slice %arg10[%c0_i32_84] : memref<8x!tpu.dma_semaphore, #tpu.memory_space<semaphore_mem>> -> memref<1x!tpu.dma_semaphore, #tpu.memory_space<semaphore_mem>>
      %148 = tpu.memref_squeeze %147 : memref<1x!tpu.dma_semaphore, #tpu.memory_space<semaphore_mem>> -> memref<!tpu.dma_semaphore, #tpu.memory_space<semaphore_mem>>
      tpu.enqueue_dma source(%145 : memref<1x128xf32, #tpu.memory_space<any>>) target(%146 : memref<1x128xf32, #tpu.memory_space<vmem>>) target_semaphore(%148 : memref<!tpu.dma_semaphore, #tpu.memory_space<semaphore_mem>>)
      %c1_i32_87 = arith.constant 1 : i32
      %c0_i32_88 = arith.constant 0 : i32
      %149 = tpu.memref_slice %arg3[%118, %c0_i32_88] : memref<256x128xf32, #tpu.memory_space<any>> -> memref<1x128xf32, #tpu.memory_space<any>>
      %c0_i32_89 = arith.constant 0 : i32
      %150 = tpu.memref_slice %arg8[%138, %c0_i32_89] : memref<16x128xf32, #tpu.memory_space<vmem>> -> memref<1x128xf32, #tpu.memory_space<vmem>>
      %151 = tpu.memref_slice %arg10[%c1_i32_87] : memref<8x!tpu.dma_semaphore, #tpu.memory_space<semaphore_mem>> -> memref<1x!tpu.dma_semaphore, #tpu.memory_space<semaphore_mem>>
      %152 = tpu.memref_squeeze %151 : memref<1x!tpu.dma_semaphore, #tpu.memory_space<semaphore_mem>> -> memref<!tpu.dma_semaphore, #tpu.memory_space<semaphore_mem>>
      tpu.enqueue_dma source(%149 : memref<1x128xf32, #tpu.memory_space<any>>) target(%150 : memref<1x128xf32, #tpu.memory_space<vmem>>) target_semaphore(%152 : memref<!tpu.dma_semaphore, #tpu.memory_space<semaphore_mem>>)
      %c2_i32_90 = arith.constant 2 : i32
      %c0_i32_91 = arith.constant 0 : i32
      %153 = tpu.memref_slice %arg3[%121, %c0_i32_91] : memref<256x128xf32, #tpu.memory_space<any>> -> memref<1x128xf32, #tpu.memory_space<any>>
      %c0_i32_92 = arith.constant 0 : i32
      %154 = tpu.memref_slice %arg8[%139, %c0_i32_92] : memref<16x128xf32, #tpu.memory_space<vmem>> -> memref<1x128xf32, #tpu.memory_space<vmem>>
      %155 = tpu.memref_slice %arg10[%c2_i32_90] : memref<8x!tpu.dma_semaphore, #tpu.memory_space<semaphore_mem>> -> memref<1x!tpu.dma_semaphore, #tpu.memory_space<semaphore_mem>>
      %156 = tpu.memref_squeeze %155 : memref<1x!tpu.dma_semaphore, #tpu.memory_space<semaphore_mem>> -> memref<!tpu.dma_semaphore, #tpu.memory_space<semaphore_mem>>
      tpu.enqueue_dma source(%153 : memref<1x128xf32, #tpu.memory_space<any>>) target(%154 : memref<1x128xf32, #tpu.memory_space<vmem>>) target_semaphore(%156 : memref<!tpu.dma_semaphore, #tpu.memory_space<semaphore_mem>>)
      %c3_i32_93 = arith.constant 3 : i32
      %c0_i32_94 = arith.constant 0 : i32
      %157 = tpu.memref_slice %arg3[%124, %c0_i32_94] : memref<256x128xf32, #tpu.memory_space<any>> -> memref<1x128xf32, #tpu.memory_space<any>>
      %c0_i32_95 = arith.constant 0 : i32
      %158 = tpu.memref_slice %arg8[%140, %c0_i32_95] : memref<16x128xf32, #tpu.memory_space<vmem>> -> memref<1x128xf32, #tpu.memory_space<vmem>>
      %159 = tpu.memref_slice %arg10[%c3_i32_93] : memref<8x!tpu.dma_semaphore, #tpu.memory_space<semaphore_mem>> -> memref<1x!tpu.dma_semaphore, #tpu.memory_space<semaphore_mem>>
      %160 = tpu.memref_squeeze %159 : memref<1x!tpu.dma_semaphore, #tpu.memory_space<semaphore_mem>> -> memref<!tpu.dma_semaphore, #tpu.memory_space<semaphore_mem>>
      tpu.enqueue_dma source(%157 : memref<1x128xf32, #tpu.memory_space<any>>) target(%158 : memref<1x128xf32, #tpu.memory_space<vmem>>) target_semaphore(%160 : memref<!tpu.dma_semaphore, #tpu.memory_space<semaphore_mem>>)
      %c4_i32_96 = arith.constant 4 : i32
      %c0_i32_97 = arith.constant 0 : i32
      %161 = tpu.memref_slice %arg3[%127, %c0_i32_97] : memref<256x128xf32, #tpu.memory_space<any>> -> memref<1x128xf32, #tpu.memory_space<any>>
      %c0_i32_98 = arith.constant 0 : i32
      %162 = tpu.memref_slice %arg8[%141, %c0_i32_98] : memref<16x128xf32, #tpu.memory_space<vmem>> -> memref<1x128xf32, #tpu.memory_space<vmem>>
      %163 = tpu.memref_slice %arg10[%c4_i32_96] : memref<8x!tpu.dma_semaphore, #tpu.memory_space<semaphore_mem>> -> memref<1x!tpu.dma_semaphore, #tpu.memory_space<semaphore_mem>>
      %164 = tpu.memref_squeeze %163 : memref<1x!tpu.dma_semaphore, #tpu.memory_space<semaphore_mem>> -> memref<!tpu.dma_semaphore, #tpu.memory_space<semaphore_mem>>
      tpu.enqueue_dma source(%161 : memref<1x128xf32, #tpu.memory_space<any>>) target(%162 : memref<1x128xf32, #tpu.memory_space<vmem>>) target_semaphore(%164 : memref<!tpu.dma_semaphore, #tpu.memory_space<semaphore_mem>>)
      %c5_i32_99 = arith.constant 5 : i32
      %c0_i32_100 = arith.constant 0 : i32
      %165 = tpu.memref_slice %arg3[%130, %c0_i32_100] : memref<256x128xf32, #tpu.memory_space<any>> -> memref<1x128xf32, #tpu.memory_space<any>>
      %c0_i32_101 = arith.constant 0 : i32
      %166 = tpu.memref_slice %arg8[%142, %c0_i32_101] : memref<16x128xf32, #tpu.memory_space<vmem>> -> memref<1x128xf32, #tpu.memory_space<vmem>>
      %167 = tpu.memref_slice %arg10[%c5_i32_99] : memref<8x!tpu.dma_semaphore, #tpu.memory_space<semaphore_mem>> -> memref<1x!tpu.dma_semaphore, #tpu.memory_space<semaphore_mem>>
      %168 = tpu.memref_squeeze %167 : memref<1x!tpu.dma_semaphore, #tpu.memory_space<semaphore_mem>> -> memref<!tpu.dma_semaphore, #tpu.memory_space<semaphore_mem>>
      tpu.enqueue_dma source(%165 : memref<1x128xf32, #tpu.memory_space<any>>) target(%166 : memref<1x128xf32, #tpu.memory_space<vmem>>) target_semaphore(%168 : memref<!tpu.dma_semaphore, #tpu.memory_space<semaphore_mem>>)
      %c6_i32_102 = arith.constant 6 : i32
      %c0_i32_103 = arith.constant 0 : i32
      %169 = tpu.memref_slice %arg3[%133, %c0_i32_103] : memref<256x128xf32, #tpu.memory_space<any>> -> memref<1x128xf32, #tpu.memory_space<any>>
      %c0_i32_104 = arith.constant 0 : i32
      %170 = tpu.memref_slice %arg8[%143, %c0_i32_104] : memref<16x128xf32, #tpu.memory_space<vmem>> -> memref<1x128xf32, #tpu.memory_space<vmem>>
      %171 = tpu.memref_slice %arg10[%c6_i32_102] : memref<8x!tpu.dma_semaphore, #tpu.memory_space<semaphore_mem>> -> memref<1x!tpu.dma_semaphore, #tpu.memory_space<semaphore_mem>>
      %172 = tpu.memref_squeeze %171 : memref<1x!tpu.dma_semaphore, #tpu.memory_space<semaphore_mem>> -> memref<!tpu.dma_semaphore, #tpu.memory_space<semaphore_mem>>
      tpu.enqueue_dma source(%169 : memref<1x128xf32, #tpu.memory_space<any>>) target(%170 : memref<1x128xf32, #tpu.memory_space<vmem>>) target_semaphore(%172 : memref<!tpu.dma_semaphore, #tpu.memory_space<semaphore_mem>>)
      %c7_i32_105 = arith.constant 7 : i32
      %c0_i32_106 = arith.constant 0 : i32
      %173 = tpu.memref_slice %arg3[%136, %c0_i32_106] : memref<256x128xf32, #tpu.memory_space<any>> -> memref<1x128xf32, #tpu.memory_space<any>>
      %c0_i32_107 = arith.constant 0 : i32
      %174 = tpu.memref_slice %arg8[%144, %c0_i32_107] : memref<16x128xf32, #tpu.memory_space<vmem>> -> memref<1x128xf32, #tpu.memory_space<vmem>>
      %175 = tpu.memref_slice %arg10[%c7_i32_105] : memref<8x!tpu.dma_semaphore, #tpu.memory_space<semaphore_mem>> -> memref<1x!tpu.dma_semaphore, #tpu.memory_space<semaphore_mem>>
      %176 = tpu.memref_squeeze %175 : memref<1x!tpu.dma_semaphore, #tpu.memory_space<semaphore_mem>> -> memref<!tpu.dma_semaphore, #tpu.memory_space<semaphore_mem>>
      tpu.enqueue_dma source(%173 : memref<1x128xf32, #tpu.memory_space<any>>) target(%174 : memref<1x128xf32, #tpu.memory_space<vmem>>) target_semaphore(%176 : memref<!tpu.dma_semaphore, #tpu.memory_space<semaphore_mem>>)
      %c0_i32_108 = arith.constant 0 : i32
      %c0_i32_109 = arith.constant 0 : i32
      %177 = tpu.memref_slice %arg3[%115, %c0_i32_109] : memref<256x128xf32, #tpu.memory_space<any>> -> memref<1x128xf32, #tpu.memory_space<any>>
      %c0_i32_110 = arith.constant 0 : i32
      %178 = tpu.memref_slice %arg8[%137, %c0_i32_110] : memref<16x128xf32, #tpu.memory_space<vmem>> -> memref<1x128xf32, #tpu.memory_space<vmem>>
      %179 = tpu.memref_slice %arg10[%c0_i32_108] : memref<8x!tpu.dma_semaphore, #tpu.memory_space<semaphore_mem>> -> memref<1x!tpu.dma_semaphore, #tpu.memory_space<semaphore_mem>>
      %180 = tpu.memref_squeeze %179 : memref<1x!tpu.dma_semaphore, #tpu.memory_space<semaphore_mem>> -> memref<!tpu.dma_semaphore, #tpu.memory_space<semaphore_mem>>
      tpu.wait_dma2 semaphore(%180 : memref<!tpu.dma_semaphore, #tpu.memory_space<semaphore_mem>>) src(%177 : memref<1x128xf32, #tpu.memory_space<any>>) dst(%178 : memref<1x128xf32, #tpu.memory_space<vmem>>)
      %c1_i32_111 = arith.constant 1 : i32
      %c0_i32_112 = arith.constant 0 : i32
      %181 = tpu.memref_slice %arg3[%118, %c0_i32_112] : memref<256x128xf32, #tpu.memory_space<any>> -> memref<1x128xf32, #tpu.memory_space<any>>
      %c0_i32_113 = arith.constant 0 : i32
      %182 = tpu.memref_slice %arg8[%138, %c0_i32_113] : memref<16x128xf32, #tpu.memory_space<vmem>> -> memref<1x128xf32, #tpu.memory_space<vmem>>
      %183 = tpu.memref_slice %arg10[%c1_i32_111] : memref<8x!tpu.dma_semaphore, #tpu.memory_space<semaphore_mem>> -> memref<1x!tpu.dma_semaphore, #tpu.memory_space<semaphore_mem>>
      %184 = tpu.memref_squeeze %183 : memref<1x!tpu.dma_semaphore, #tpu.memory_space<semaphore_mem>> -> memref<!tpu.dma_semaphore, #tpu.memory_space<semaphore_mem>>
      tpu.wait_dma2 semaphore(%184 : memref<!tpu.dma_semaphore, #tpu.memory_space<semaphore_mem>>) src(%181 : memref<1x128xf32, #tpu.memory_space<any>>) dst(%182 : memref<1x128xf32, #tpu.memory_space<vmem>>)
      %c2_i32_114 = arith.constant 2 : i32
      %c0_i32_115 = arith.constant 0 : i32
      %185 = tpu.memref_slice %arg3[%121, %c0_i32_115] : memref<256x128xf32, #tpu.memory_space<any>> -> memref<1x128xf32, #tpu.memory_space<any>>
      %c0_i32_116 = arith.constant 0 : i32
      %186 = tpu.memref_slice %arg8[%139, %c0_i32_116] : memref<16x128xf32, #tpu.memory_space<vmem>> -> memref<1x128xf32, #tpu.memory_space<vmem>>
      %187 = tpu.memref_slice %arg10[%c2_i32_114] : memref<8x!tpu.dma_semaphore, #tpu.memory_space<semaphore_mem>> -> memref<1x!tpu.dma_semaphore, #tpu.memory_space<semaphore_mem>>
      %188 = tpu.memref_squeeze %187 : memref<1x!tpu.dma_semaphore, #tpu.memory_space<semaphore_mem>> -> memref<!tpu.dma_semaphore, #tpu.memory_space<semaphore_mem>>
      tpu.wait_dma2 semaphore(%188 : memref<!tpu.dma_semaphore, #tpu.memory_space<semaphore_mem>>) src(%185 : memref<1x128xf32, #tpu.memory_space<any>>) dst(%186 : memref<1x128xf32, #tpu.memory_space<vmem>>)
      %c3_i32_117 = arith.constant 3 : i32
      %c0_i32_118 = arith.constant 0 : i32
      %189 = tpu.memref_slice %arg3[%124, %c0_i32_118] : memref<256x128xf32, #tpu.memory_space<any>> -> memref<1x128xf32, #tpu.memory_space<any>>
      %c0_i32_119 = arith.constant 0 : i32
      %190 = tpu.memref_slice %arg8[%140, %c0_i32_119] : memref<16x128xf32, #tpu.memory_space<vmem>> -> memref<1x128xf32, #tpu.memory_space<vmem>>
      %191 = tpu.memref_slice %arg10[%c3_i32_117] : memref<8x!tpu.dma_semaphore, #tpu.memory_space<semaphore_mem>> -> memref<1x!tpu.dma_semaphore, #tpu.memory_space<semaphore_mem>>
      %192 = tpu.memref_squeeze %191 : memref<1x!tpu.dma_semaphore, #tpu.memory_space<semaphore_mem>> -> memref<!tpu.dma_semaphore, #tpu.memory_space<semaphore_mem>>
      tpu.wait_dma2 semaphore(%192 : memref<!tpu.dma_semaphore, #tpu.memory_space<semaphore_mem>>) src(%189 : memref<1x128xf32, #tpu.memory_space<any>>) dst(%190 : memref<1x128xf32, #tpu.memory_space<vmem>>)
      %c4_i32_120 = arith.constant 4 : i32
      %c0_i32_121 = arith.constant 0 : i32
      %193 = tpu.memref_slice %arg3[%127, %c0_i32_121] : memref<256x128xf32, #tpu.memory_space<any>> -> memref<1x128xf32, #tpu.memory_space<any>>
      %c0_i32_122 = arith.constant 0 : i32
      %194 = tpu.memref_slice %arg8[%141, %c0_i32_122] : memref<16x128xf32, #tpu.memory_space<vmem>> -> memref<1x128xf32, #tpu.memory_space<vmem>>
      %195 = tpu.memref_slice %arg10[%c4_i32_120] : memref<8x!tpu.dma_semaphore, #tpu.memory_space<semaphore_mem>> -> memref<1x!tpu.dma_semaphore, #tpu.memory_space<semaphore_mem>>
      %196 = tpu.memref_squeeze %195 : memref<1x!tpu.dma_semaphore, #tpu.memory_space<semaphore_mem>> -> memref<!tpu.dma_semaphore, #tpu.memory_space<semaphore_mem>>
      tpu.wait_dma2 semaphore(%196 : memref<!tpu.dma_semaphore, #tpu.memory_space<semaphore_mem>>) src(%193 : memref<1x128xf32, #tpu.memory_space<any>>) dst(%194 : memref<1x128xf32, #tpu.memory_space<vmem>>)
      %c5_i32_123 = arith.constant 5 : i32
      %c0_i32_124 = arith.constant 0 : i32
      %197 = tpu.memref_slice %arg3[%130, %c0_i32_124] : memref<256x128xf32, #tpu.memory_space<any>> -> memref<1x128xf32, #tpu.memory_space<any>>
      %c0_i32_125 = arith.constant 0 : i32
      %198 = tpu.memref_slice %arg8[%142, %c0_i32_125] : memref<16x128xf32, #tpu.memory_space<vmem>> -> memref<1x128xf32, #tpu.memory_space<vmem>>
      %199 = tpu.memref_slice %arg10[%c5_i32_123] : memref<8x!tpu.dma_semaphore, #tpu.memory_space<semaphore_mem>> -> memref<1x!tpu.dma_semaphore, #tpu.memory_space<semaphore_mem>>
      %200 = tpu.memref_squeeze %199 : memref<1x!tpu.dma_semaphore, #tpu.memory_space<semaphore_mem>> -> memref<!tpu.dma_semaphore, #tpu.memory_space<semaphore_mem>>
      tpu.wait_dma2 semaphore(%200 : memref<!tpu.dma_semaphore, #tpu.memory_space<semaphore_mem>>) src(%197 : memref<1x128xf32, #tpu.memory_space<any>>) dst(%198 : memref<1x128xf32, #tpu.memory_space<vmem>>)
      %c6_i32_126 = arith.constant 6 : i32
      %c0_i32_127 = arith.constant 0 : i32
      %201 = tpu.memref_slice %arg3[%133, %c0_i32_127] : memref<256x128xf32, #tpu.memory_space<any>> -> memref<1x128xf32, #tpu.memory_space<any>>
      %c0_i32_128 = arith.constant 0 : i32
      %202 = tpu.memref_slice %arg8[%143, %c0_i32_128] : memref<16x128xf32, #tpu.memory_space<vmem>> -> memref<1x128xf32, #tpu.memory_space<vmem>>
      %203 = tpu.memref_slice %arg10[%c6_i32_126] : memref<8x!tpu.dma_semaphore, #tpu.memory_space<semaphore_mem>> -> memref<1x!tpu.dma_semaphore, #tpu.memory_space<semaphore_mem>>
      %204 = tpu.memref_squeeze %203 : memref<1x!tpu.dma_semaphore, #tpu.memory_space<semaphore_mem>> -> memref<!tpu.dma_semaphore, #tpu.memory_space<semaphore_mem>>
      tpu.wait_dma2 semaphore(%204 : memref<!tpu.dma_semaphore, #tpu.memory_space<semaphore_mem>>) src(%201 : memref<1x128xf32, #tpu.memory_space<any>>) dst(%202 : memref<1x128xf32, #tpu.memory_space<vmem>>)
      %c7_i32_129 = arith.constant 7 : i32
      %c0_i32_130 = arith.constant 0 : i32
      %205 = tpu.memref_slice %arg3[%136, %c0_i32_130] : memref<256x128xf32, #tpu.memory_space<any>> -> memref<1x128xf32, #tpu.memory_space<any>>
      %c0_i32_131 = arith.constant 0 : i32
      %206 = tpu.memref_slice %arg8[%144, %c0_i32_131] : memref<16x128xf32, #tpu.memory_space<vmem>> -> memref<1x128xf32, #tpu.memory_space<vmem>>
      %207 = tpu.memref_slice %arg10[%c7_i32_129] : memref<8x!tpu.dma_semaphore, #tpu.memory_space<semaphore_mem>> -> memref<1x!tpu.dma_semaphore, #tpu.memory_space<semaphore_mem>>
      %208 = tpu.memref_squeeze %207 : memref<1x!tpu.dma_semaphore, #tpu.memory_space<semaphore_mem>> -> memref<!tpu.dma_semaphore, #tpu.memory_space<semaphore_mem>>
      tpu.wait_dma2 semaphore(%208 : memref<!tpu.dma_semaphore, #tpu.memory_space<semaphore_mem>>) src(%205 : memref<1x128xf32, #tpu.memory_space<any>>) dst(%206 : memref<1x128xf32, #tpu.memory_space<vmem>>)
      %c2_i32_132 = arith.constant 2 : i32
      %c0_133 = arith.constant 0 : index
      %c0_134 = arith.constant 0 : index
      %209 = vector.load %arg8[%c0_133, %c0_134] : memref<16x128xf32, #tpu.memory_space<vmem>>, vector<8x128xf32>
      %c0_135 = arith.constant 0 : index
      %c0_136 = arith.constant 0 : index
      %210 = vector.load %arg4[%c0_135, %c0_136] : memref<8x128xf32, #tpu.memory_space<vmem>>, vector<8x128xf32>
      %211 = arith.addf %209, %210 : vector<8x128xf32>
      %c0_137 = arith.constant 0 : index
      %c0_138 = arith.constant 0 : index
      %212 = vector.load %arg8[%c0_137, %c0_138] : memref<16x128xf32, #tpu.memory_space<vmem>>, vector<8x128xf32>
      tpu.vector_store %arg8[%c0_137, %c0_138], %211 {strides = array<i32>} : memref<16x128xf32, #tpu.memory_space<vmem>>, vector<8x128xf32>,
      %c8 = arith.constant 8 : index
      %c0_139 = arith.constant 0 : index
      %213 = vector.load %arg8[%c8, %c0_139] : memref<16x128xf32, #tpu.memory_space<vmem>>, vector<8x128xf32>
      %c0_140 = arith.constant 0 : index
      %c0_141 = arith.constant 0 : index
      %214 = vector.load %arg4[%c0_140, %c0_141] : memref<8x128xf32, #tpu.memory_space<vmem>>, vector<8x128xf32>
      %215 = arith.addf %213, %214 : vector<8x128xf32>
      %c8_142 = arith.constant 8 : index
      %c0_143 = arith.constant 0 : index
      %216 = vector.load %arg8[%c8_142, %c0_143] : memref<16x128xf32, #tpu.memory_space<vmem>>, vector<8x128xf32>
      tpu.vector_store %arg8[%c8_142, %c0_143], %215 {strides = array<i32>} : memref<16x128xf32, #tpu.memory_space<vmem>>, vector<8x128xf32>,
      %c0_144 = arith.constant 0 : index
      %c0_145 = arith.constant 0 : index
      %217 = vector.load %arg8[%c0_144, %c0_145] : memref<16x128xf32, #tpu.memory_space<vmem>>, vector<16x128xf32>
      %218 = arith.truncf %217 : vector<16x128xf32> to vector<16x128xbf16>
      %c0_146 = arith.constant 0 : index
      %c0_147 = arith.constant 0 : index
      %219 = vector.load %arg9[%c0_146, %c0_147] : memref<16x128xbf16, #tpu.memory_space<vmem>>, vector<16x128xbf16>
      tpu.vector_store %arg9[%c0_146, %c0_147], %218 {strides = array<i32>} : memref<16x128xbf16, #tpu.memory_space<vmem>>, vector<16x128xbf16>,
    } else {
    }
    %c16_i32 = arith.constant 16 : i32
    %5 = arith.muli %arg1, %c16_i32 : i32
    %6 = tpu.assume_multiple %5, 8 : i32
    %7 = arith.index_cast %6 : i32 to index
    %c0 = arith.constant 0 : index
    %8 = vector.load %arg9[%7, %c0] : memref<16x128xbf16, #tpu.memory_space<vmem>>, vector<16x128xbf16>
    %c0_2 = arith.constant 0 : index
    %c0_3 = arith.constant 0 : index
    %9 = vector.load %arg5[%c0_2, %c0_3] : memref<128x256xbf16, #tpu.memory_space<vmem>>, vector<128x256xbf16>
    %cst = arith.constant dense<0.000000e+00> : vector<16x256xf32>
    %10 = tpu.matmul %8, %9, %cst {dimension_numbers = #tpu.dot_dimension_numbers<[1], [0], [0], [1], [0, 0, 1, 1], [], []>} : vector<16x128xbf16>, vector<128x256xbf16>, vector<16x256xf32> -> vector<16x256xf32>
    %c0_4 = arith.constant 0 : index
    %c0_5 = arith.constant 0 : index
    %11 = vector.load %arg6[%c0_4, %c0_5] : memref<1x256xf32, #tpu.memory_space<vmem>>, vector<1x256xf32>
    %12 = vector.broadcast %11 : vector<1x256xf32> to vector<16x256xf32>
    %13 = arith.addf %10, %12 : vector<16x256xf32>
    %c0_6 = arith.constant 0 : index
    %c0_7 = arith.constant 0 : index
    %14 = vector.load %arg7[%c0_6, %c0_7] : memref<16x256xf32, #tpu.memory_space<vmem>>, vector<16x256xf32>
    tpu.vector_store %arg7[%c0_6, %c0_7], %13 {strides = array<i32>} : memref<16x256xf32, #tpu.memory_space<vmem>>, vector<16x256xf32>,
    return
  }
  func.func @transform_1(%arg0: i32, %arg1: i32, %arg2: memref<16xi32, #tpu.memory_space<smem>>) -> (i32, i32) {
    %c0_i32 = arith.constant 0 : i32
    %c0_i32_0 = arith.constant 0 : i32
    %c0_i32_1 = arith.constant 0 : i32
    return %c0_i32, %c0_i32_0 : i32, i32
  }
  func.func @transform_2(%arg0: i32, %arg1: i32, %arg2: memref<16xi32, #tpu.memory_space<smem>>) -> (i32, i32) {
    %c0_i32 = arith.constant 0 : i32
    %c0_i32_0 = arith.constant 0 : i32
    return %c0_i32, %arg0 : i32, i32
  }
  func.func @transform_3(%arg0: i32, %arg1: i32, %arg2: memref<16xi32, #tpu.memory_space<smem>>) -> (i32, i32) {
    %c0_i32 = arith.constant 0 : i32
    %c0_i32_0 = arith.constant 0 : i32
    return %c0_i32, %arg0 : i32, i32
  }
  func.func @transform_4(%arg0: i32, %arg1: i32, %arg2: memref<16xi32, #tpu.memory_space<smem>>) -> (i32, i32) {
    %c0_i32 = arith.constant 0 : i32
    return %arg1, %arg0 : i32, i32
  }
}

</mosaic_0001>

<llo_original>
// kernel: tpu_custom_call.1
$region0: #{tpu_custom_call.1}
  #allocation0 [shape = 'u32[]', space=smem, size = 0x4, offset = 0x4, fixed_abs, tag = 'smem constant byte address 0x4 - core index']
  #allocation1 [shape = 'u32[72,128]{1,0:T(1,128)}', space=vmem, size = 0x9000, scoped, tag = 'internal scratch']
  #allocation2 [shape = 'f32[16,128]{1,0:T(8,128)}', space=vmem, size = 0x2000, scoped, tag = 'scratch operand']
  #allocation3 [shape = 'bf16[16,128]{1,0:T(8,128)(2,1)}', space=vmem, size = 0x1000, scoped, tag = 'scratch operand']
  #allocation4 [shape = 's32[8]{0}', space=sflag, size = 0x20, scoped, tag = 'scratch operand']
  #allocation5 [shape = 's32[1]{0}', space=sflag, size = 0x4, scoped, tag = 'scoped memory for tpu_custom_call.1']
  #allocation6 [shape = 'u8[512]{0}', space=smem, size = 0x200, scoped, tag = 'prefetched SMEM operand 0']
  #allocation13 [shape = 's32[]', space=sflag, size = 0x4, offset = 0, fixed_abs, tag = 'sflag constant byte address 0x0 - dummy sync flag']
  #allocation14 [shape = 's32[]', space=sflag, size = 0x4, offset = 0, fixed_abs, tag = 'sflag constant byte address 0x0 - dummy sync flag']
  #allocation15 [shape = 'u32[]', space=smem, size = 0x4, offset = 0x44, fixed_abs, tag = 'smem constant byte address 0x44 - assertion arg 0']
  #allocation16 [shape = 'u32[]', space=smem, size = 0x4, offset = 0x48, fixed_abs, tag = 'smem constant byte address 0x48 - assertion arg 1']
  #allocation17 [shape = 's32[]', space=sflag, size = 0x4, offset = 0, fixed_abs, tag = 'sflag constant byte address 0x0 - dummy sync flag']
  #allocation18 [shape = 's32[]', space=sflag, size = 0x4, offset = 0, fixed_abs, tag = 'sflag constant byte address 0x0 - dummy sync flag']
  #allocation19 [shape = 's32[]', space=sflag, size = 0x4, offset = 0, fixed_abs, tag = 'sflag constant byte address 0x0 - dummy sync flag']
  #allocation20 [shape = 's32[]', space=sflag, size = 0x4, offset = 0, fixed_abs, tag = 'sflag constant byte address 0x0 - dummy sync flag']
  #allocation21 [shape = 's32[]', space=sflag, size = 0x4, offset = 0, fixed_abs, tag = 'sflag constant byte address 0x0 - dummy sync flag']
  #allocation22 [shape = 's32[]', space=sflag, size = 0x4, offset = 0, fixed_abs, tag = 'sflag constant byte address 0x0 - dummy sync flag']
  #allocation23 [shape = 's32[]', space=sflag, size = 0x4, offset = 0, fixed_abs, tag = 'sflag constant byte address 0x0 - dummy sync flag']
  #allocation24 [shape = 's32[]', space=sflag, size = 0x4, offset = 0, fixed_abs, tag = 'sflag constant byte address 0x0 - dummy sync flag']
  #allocation25 [shape = 's32[]', space=sflag, size = 0x4, offset = 0, fixed_abs, tag = 'sflag constant byte address 0x0 - dummy sync flag']
  #allocation26 [shape = 's32[]', space=sflag, size = 0x4, offset = 0, fixed_abs, tag = 'sflag constant byte address 0x0 - dummy sync flag']
  #allocation27 [shape = 's32[]', space=sflag, size = 0x4, offset = 0, fixed_abs, tag = 'sflag constant byte address 0x0 - dummy sync flag']
  #allocation28 [shape = 's32[]', space=sflag, size = 0x4, offset = 0, fixed_abs, tag = 'sflag constant byte address 0x0 - dummy sync flag']
  #allocation29 [shape = 's32[]', space=sflag, size = 0x4, offset = 0, fixed_abs, tag = 'sflag constant byte address 0x0 - dummy sync flag']
  #allocation30 [shape = 's32[]', space=sflag, size = 0x4, offset = 0, fixed_abs, tag = 'sflag constant byte address 0x0 - dummy sync flag']
  #allocation31 [shape = 's32[]', space=sflag, size = 0x4, offset = 0, fixed_abs, tag = 'sflag constant byte address 0x0 - dummy sync flag']
  #allocation32 [shape = 's32[]', space=sflag, size = 0x4, offset = 0, fixed_abs, tag = 'sflag constant byte address 0x0 - dummy sync flag']
  #allocation33 [shape = 's32[]', space=sflag, size = 0x4, offset = 0, fixed_abs, tag = 'sflag constant byte address 0x0 - dummy sync flag']
  #allocation34 [shape = 's32[]', space=sflag, size = 0x4, offset = 0, fixed_abs, tag = 'sflag constant byte address 0x0 - dummy sync flag']
  #allocation35 [shape = 's32[]', space=sflag, size = 0x4, offset = 0, fixed_abs, tag = 'sflag constant byte address 0x0 - dummy sync flag']
  #allocation36 [shape = 's32[]', space=sflag, size = 0x4, offset = 0, fixed_abs, tag = 'sflag constant byte address 0x0 - dummy sync flag']
  #allocation37 [shape = 's32[]', space=sflag, size = 0x4, offset = 0, fixed_abs, tag = 'sflag constant byte address 0x0 - dummy sync flag']
  #allocation38 [shape = 's32[]', space=sflag, size = 0x4, offset = 0, fixed_abs, tag = 'sflag constant byte address 0x0 - dummy sync flag']
  #allocation39 [shape = 's32[]', space=sflag, size = 0x4, offset = 0, fixed_abs, tag = 'sflag constant byte address 0x0 - dummy sync flag']
  #allocation40 [shape = 's32[]', space=sflag, size = 0x4, offset = 0, fixed_abs, tag = 'sflag constant byte address 0x0 - dummy sync flag']
  #allocation41 [shape = 's32[]', space=sflag, size = 0x4, offset = 0, fixed_abs, tag = 'sflag constant byte address 0x0 - dummy sync flag']
  #allocation42 [shape = 's32[]', space=sflag, size = 0x4, offset = 0, fixed_abs, tag = 'sflag constant byte address 0x0 - dummy sync flag']
  #allocation43 [shape = 's32[]', space=sflag, size = 0x4, offset = 0, fixed_abs, tag = 'sflag constant byte address 0x0 - dummy sync flag']
  #allocation44 [shape = 's32[]', space=sflag, size = 0x4, offset = 0, fixed_abs, tag = 'sflag constant byte address 0x0 - dummy sync flag']
  #allocation45 [shape = 's32[]', space=sflag, size = 0x4, offset = 0, fixed_abs, tag = 'sflag constant byte address 0x0 - dummy sync flag']
  #allocation46 [shape = 's32[]', space=sflag, size = 0x4, offset = 0, fixed_abs, tag = 'sflag constant byte address 0x0 - dummy sync flag']
  %s0 = inlined_call_operand.hbm [shape: s32[16], index: 0, kind: input, shape index: {}]
  %s1 = inlined_call_operand.hbm [shape: f32[256,128], index: 1, kind: input, shape index: {}]
  %s2 = inlined_call_operand.hbm [shape: f32[8,128], index: 2, kind: input, shape index: {}]
  %s3 = inlined_call_operand.hbm [shape: bf16[128,256], index: 3, kind: input, shape index: {}]
  %s4 = inlined_call_operand.vmem [shape: f32[1,256], index: 4, kind: input, shape index: {}]
  %s5 = inlined_call_operand.hbm [shape: f32[16,256], index: 5, kind: output, shape index: {}]
  %s6 = sld [smem:[#allocation0]]
  $region98: #{tpu_custom_call.1} parent=0
    _
  %s8 = ssub.s32 1, %s6
  %s9 = scalar_select 0, %s8, %s6
  %s11 = sshll.u32 %s0, 4
  %s12 = int_to_ptr.hbm [resolvable:$true] %s11
  %14 = dma.hbm_to_smem %s12, 16, [#allocation6], [#allocation5]
  %16 = dma.done [#allocation5], 16
  %17 = sfence
  $region1: #{tpu_custom_call.1} parent=0
    #allocation7 [shape = 'u8[4096]{0}', space=vmem, size = 0x1000, scoped, tag = 'input window, operand 2, single buffered']
    #allocation8 [shape = 's32[1]{0}', space=sflag, size = 0x4, scoped, tag = 'scoped memory for tpu_custom_call.1']
    #allocation9 [shape = 's32[1]{0}', space=sflag, size = 0x4, scoped, tag = 'scoped memory for tpu_custom_call.1']
    #allocation10 [shape = 'u8[65536]{0}', space=vmem, size = 0x10000, scoped, tag = 'input window, operand 3, single buffered']
    #allocation11 [shape = 's32[1]{0}', space=sflag, size = 0x4, scoped, tag = 'scoped memory for tpu_custom_call.1']
    #allocation12 [shape = 'u8[16384]{0}', space=vmem, size = 0x4000, scoped, tag = 'output window, operand 0, single buffered']
    %18 = vsyncpa [#allocation8], 0
    %19 = vsyncpa [#allocation11], 0
    %20 = vsyncpa [#allocation9], 0
    // Predicated region
    $region2: #{tpu_custom_call.1} parent=1 // pred_check
      _
    $region3: #{tpu_custom_call.1} parent=1 // pred_check_branch
      %22 = sbr.rel (0) target = $region5
    $region4: #{tpu_custom_call.1} parent=1 // pred_region
      %24 = vsyncadd [#allocation8], 0
      %s26 = sshll.u32 %s2, 4
      %s27 = int_to_ptr.hbm [resolvable:$true] %s26
      %s28 = sshll.u32 [#allocation7], 4
      %s29 = int_to_ptr.vmem [resolvable:$true] %s28
      %31 = dma.hbm_to_vmem [thread:$0]  %s27, 128, %s29, [#allocation8]
    $region5: #{tpu_custom_call.1} parent=1 // pred_fallthru
      _
    // Predicated region
    $region6: #{tpu_custom_call.1} parent=1 // pred_check
      _
    $region7: #{tpu_custom_call.1} parent=1 // pred_check_branch
      %33 = sbr.rel (0) target = $region9
    $region8: #{tpu_custom_call.1} parent=1 // pred_region
      %35 = vsyncadd [#allocation11], 0
      %s36 = sshll.u32 %s3, 4
      %s37 = int_to_ptr.hbm [resolvable:$true] %s36
      %s38 = sshll.u32 [#allocation10], 4
      %s39 = int_to_ptr.vmem [resolvable:$true] %s38
      %44 = dma.hbm_to_vmem [thread:$0]  %s37, 2048, %s39, [#allocation11], 128, 128, 8
    $region9: #{tpu_custom_call.1} parent=1 // pred_fallthru
      _
    // Predicated region
    $region10: #{tpu_custom_call.1} parent=1 // pred_check
      _
    $region11: #{tpu_custom_call.1} parent=1 // pred_check_branch
      %46 = sbr.rel (0) target = $region13
    $region12: #{tpu_custom_call.1} parent=1 // pred_region
      _
    $region13: #{tpu_custom_call.1} parent=1 // pred_fallthru
      _
    // Predicated region
    $region14: #{tpu_custom_call.1} parent=1 // pred_check
      _
    $region15: #{tpu_custom_call.1} parent=1 // pred_check_branch
      %48 = sbr.rel (0) target = $region17
    $region16: #{tpu_custom_call.1} parent=1 // pred_region
      %50 = dma.done [#allocation8], 128
    $region17: #{tpu_custom_call.1} parent=1 // pred_fallthru
      _
    // Predicated region
    $region18: #{tpu_custom_call.1} parent=1 // pred_check
      _
    $region19: #{tpu_custom_call.1} parent=1 // pred_check_branch
      %52 = sbr.rel (0) target = $region21
    $region20: #{tpu_custom_call.1} parent=1 // pred_region
      %54 = dma.done [#allocation11], 2048
    $region21: #{tpu_custom_call.1} parent=1 // pred_fallthru
      _
    %p55 = scmp.eq.s32.totalorder 0, 0
    %p56 = scmp.eq.s32.totalorder 0, 0
    %p57 = pnand %p55, %p56
    %p58 = pneg %p57
    // Predicated region
    $region22: #{tpu_custom_call.1} parent=1 // pred_check
      _
    $region23: #{tpu_custom_call.1} parent=1 // pred_check_branch
      %60 = sbr.rel (%p57) target = $region25
    $region24: #{tpu_custom_call.1} parent=1 // pred_region
      %s61 = sld [smem:[#allocation6]]
      %s62 = sld [smem:[#allocation6 + $0x1]]
      %s63 = sld [smem:[#allocation6 + $0x2]]
      %s64 = sld [smem:[#allocation6 + $0x3]]
      %s65 = sld [smem:[#allocation6 + $0x4]]
      %s66 = sld [smem:[#allocation6 + $0x5]]
      %s67 = sld [smem:[#allocation6 + $0x6]]
      %s68 = sld [smem:[#allocation6 + $0x7]]
      %s69 = scalar_lea.hbm %s1, %s61
      // Predicated region
      $region26: #{tpu_custom_call.1} parent=24 // pred_check
        _
      $region27: #{tpu_custom_call.1} parent=24 // pred_check_branch
        %71 = sbr.rel target = $region29
      $region28: #{tpu_custom_call.1} parent=24 // pred_region
        %72 = sst [smem:[#allocation15]] [#allocation14]
        %73 = sst [smem:[#allocation16]] [#allocation13]
      $region29: #{tpu_custom_call.1} parent=24 // pred_fallthru
        _
      %75 = shalt.err (0)
      %s77 = sshll.u32 %s69, 4
      %s78 = int_to_ptr.hbm [resolvable:$true] %s77
      %s79 = sshll.u32 [#allocation2], 4
      %s80 = int_to_ptr.vmem [resolvable:$true] %s79
      %82 = dma.hbm_to_vmem [thread:$0]  %s78, 16, %s80, [#allocation4]
      %s83 = scalar_lea.hbm %s1, %s62
      %s84 = scalar_lea.vmem [#allocation2], 1
      %s85 = scalar_lea.sflag [#allocation4], 1
      // Predicated region
      $region30: #{tpu_custom_call.1} parent=24 // pred_check
        _
      $region31: #{tpu_custom_call.1} parent=24 // pred_check_branch
        %87 = sbr.rel target = $region33
      $region32: #{tpu_custom_call.1} parent=24 // pred_region
        %88 = sst [smem:[#allocation15]] [#allocation18]
        %89 = sst [smem:[#allocation16]] [#allocation17]
      $region33: #{tpu_custom_call.1} parent=24 // pred_fallthru
        _
      %91 = shalt.err (0)
      %s93 = sshll.u32 %s83, 4
      %s94 = int_to_ptr.hbm [resolvable:$true] %s93
      %s95 = sshll.u32 %s84, 4
      %s96 = int_to_ptr.vmem [resolvable:$true] %s95
      %98 = dma.hbm_to_vmem [thread:$0]  %s94, 16, %s96, %s85
      %s99 = scalar_lea.hbm %s1, %s63
      %s100 = scalar_lea.vmem [#allocation2], 2
      %s101 = scalar_lea.sflag [#allocation4], 2
      // Predicated region
      $region34: #{tpu_custom_call.1} parent=24 // pred_check
        _
      $region35: #{tpu_custom_call.1} parent=24 // pred_check_branch
        %103 = sbr.rel target = $region37
      $region36: #{tpu_custom_call.1} parent=24 // pred_region
        %104 = sst [smem:[#allocation15]] [#allocation20]
        %105 = sst [smem:[#allocation16]] [#allocation19]
      $region37: #{tpu_custom_call.1} parent=24 // pred_fallthru
        _
      %107 = shalt.err (0)
      %s109 = sshll.u32 %s99, 4
      %s110 = int_to_ptr.hbm [resolvable:$true] %s109
      %s111 = sshll.u32 %s100, 4
      %s112 = int_to_ptr.vmem [resolvable:$true] %s111
      %114 = dma.hbm_to_vmem [thread:$0]  %s110, 16, %s112, %s101
      %s115 = scalar_lea.hbm %s1, %s64
      %s116 = scalar_lea.vmem [#allocation2], 3
      %s117 = scalar_lea.sflag [#allocation4], 3
      // Predicated region
      $region38: #{tpu_custom_call.1} parent=24 // pred_check
        _
      $region39: #{tpu_custom_call.1} parent=24 // pred_check_branch
        %119 = sbr.rel target = $region41
      $region40: #{tpu_custom_call.1} parent=24 // pred_region
        %120 = sst [smem:[#allocation15]] [#allocation22]
        %121 = sst [smem:[#allocation16]] [#allocation21]
      $region41: #{tpu_custom_call.1} parent=24 // pred_fallthru
        _
      %123 = shalt.err (0)
      %s125 = sshll.u32 %s115, 4
      %s126 = int_to_ptr.hbm [resolvable:$true] %s125
      %s127 = sshll.u32 %s116, 4
      %s128 = int_to_ptr.vmem [resolvable:$true] %s127
      %130 = dma.hbm_to_vmem [thread:$0]  %s126, 16, %s128, %s117
      %s131 = scalar_lea.hbm %s1, %s65
      %s132 = scalar_lea.vmem [#allocation2], 4
      %s133 = scalar_lea.sflag [#allocation4], 4
      // Predicated region
      $region42: #{tpu_custom_call.1} parent=24 // pred_check
        _
      $region43: #{tpu_custom_call.1} parent=24 // pred_check_branch
        %135 = sbr.rel target = $region45
      $region44: #{tpu_custom_call.1} parent=24 // pred_region
        %136 = sst [smem:[#allocation15]] [#allocation24]
        %137 = sst [smem:[#allocation16]] [#allocation23]
      $region45: #{tpu_custom_call.1} parent=24 // pred_fallthru
        _
      %139 = shalt.err (0)
      %s141 = sshll.u32 %s131, 4
      %s142 = int_to_ptr.hbm [resolvable:$true] %s141
      %s143 = sshll.u32 %s132, 4
      %s144 = int_to_ptr.vmem [resolvable:$true] %s143
      %146 = dma.hbm_to_vmem [thread:$0]  %s142, 16, %s144, %s133
      %s147 = scalar_lea.hbm %s1, %s66
      %s148 = scalar_lea.vmem [#allocation2], 5
      %s149 = scalar_lea.sflag [#allocation4], 5
      // Predicated region
      $region46: #{tpu_custom_call.1} parent=24 // pred_check
        _
      $region47: #{tpu_custom_call.1} parent=24 // pred_check_branch
        %151 = sbr.rel target = $region49
      $region48: #{tpu_custom_call.1} parent=24 // pred_region
        %152 = sst [smem:[#allocation15]] [#allocation26]
        %153 = sst [smem:[#allocation16]] [#allocation25]
      $region49: #{tpu_custom_call.1} parent=24 // pred_fallthru
        _
      %155 = shalt.err (0)
      %s157 = sshll.u32 %s147, 4
      %s158 = int_to_ptr.hbm [resolvable:$true] %s157
      %s159 = sshll.u32 %s148, 4
      %s160 = int_to_ptr.vmem [resolvable:$true] %s159
      %162 = dma.hbm_to_vmem [thread:$0]  %s158, 16, %s160, %s149
      %s163 = scalar_lea.hbm %s1, %s67
      %s164 = scalar_lea.vmem [#allocation2], 6
      %s165 = scalar_lea.sflag [#allocation4], 6
      // Predicated region
      $region50: #{tpu_custom_call.1} parent=24 // pred_check
        _
      $region51: #{tpu_custom_call.1} parent=24 // pred_check_branch
        %167 = sbr.rel target = $region53
      $region52: #{tpu_custom_call.1} parent=24 // pred_region
        %168 = sst [smem:[#allocation15]] [#allocation28]
        %169 = sst [smem:[#allocation16]] [#allocation27]
      $region53: #{tpu_custom_call.1} parent=24 // pred_fallthru
        _
      %171 = shalt.err (0)
      %s173 = sshll.u32 %s163, 4
      %s174 = int_to_ptr.hbm [resolvable:$true] %s173
      %s175 = sshll.u32 %s164, 4
      %s176 = int_to_ptr.vmem [resolvable:$true] %s175
      %178 = dma.hbm_to_vmem [thread:$0]  %s174, 16, %s176, %s165
      %s179 = scalar_lea.hbm %s1, %s68
      %s180 = scalar_lea.vmem [#allocation2], 7
      %s181 = scalar_lea.sflag [#allocation4], 7
      // Predicated region
      $region54: #{tpu_custom_call.1} parent=24 // pred_check
        _
      $region55: #{tpu_custom_call.1} parent=24 // pred_check_branch
        %183 = sbr.rel target = $region57
      $region56: #{tpu_custom_call.1} parent=24 // pred_region
        %184 = sst [smem:[#allocation15]] [#allocation30]
        %185 = sst [smem:[#allocation16]] [#allocation29]
      $region57: #{tpu_custom_call.1} parent=24 // pred_fallthru
        _
      %187 = shalt.err (0)
      %s189 = sshll.u32 %s179, 4
      %s190 = int_to_ptr.hbm [resolvable:$true] %s189
      %s191 = sshll.u32 %s180, 4
      %s192 = int_to_ptr.vmem [resolvable:$true] %s191
      %194 = dma.hbm_to_vmem [thread:$0]  %s190, 16, %s192, %s181
      %s195 = smul.u32 1, 1
      %s196 = sshll.u32 %s195, 4
      %197 = dma.done [#allocation4], %s196
      %s198 = sshll.u32 %s195, 4
      %199 = dma.done %s85, %s198
      %s200 = sshll.u32 %s195, 4
      %201 = dma.done %s101, %s200
      %s202 = sshll.u32 %s195, 4
      %203 = dma.done %s117, %s202
      %s204 = sshll.u32 %s195, 4
      %205 = dma.done %s133, %s204
      %s206 = sshll.u32 %s195, 4
      %207 = dma.done %s149, %s206
      %s208 = sshll.u32 %s195, 4
      %209 = dma.done %s165, %s208
      %s210 = sshll.u32 %s195, 4
      %211 = dma.done %s181, %s210
      %s212 = sld [smem:[#allocation6 + $0x8]]
      %s213 = sld [smem:[#allocation6 + $0x9]]
      %s214 = sld [smem:[#allocation6 + $0xa]]
      %s215 = sld [smem:[#allocation6 + $0xb]]
      %s216 = sld [smem:[#allocation6 + $0xc]]
      %s217 = sld [smem:[#allocation6 + $0xd]]
      %s218 = sld [smem:[#allocation6 + $0xe]]
      %s219 = sld [smem:[#allocation6 + $0xf]]
      %s220 = scalar_lea.hbm %s1, %s212
      %s221 = scalar_lea.vmem [#allocation2], 8
      // Predicated region
      $region58: #{tpu_custom_call.1} parent=24 // pred_check
        _
      $region59: #{tpu_custom_call.1} parent=24 // pred_check_branch
        %223 = sbr.rel target = $region61
      $region60: #{tpu_custom_call.1} parent=24 // pred_region
        %224 = sst [smem:[#allocation15]] [#allocation32]
        %225 = sst [smem:[#allocation16]] [#allocation31]
      $region61: #{tpu_custom_call.1} parent=24 // pred_fallthru
        _
      %227 = shalt.err (0)
      %s229 = sshll.u32 %s220, 4
      %s230 = int_to_ptr.hbm [resolvable:$true] %s229
      %s231 = sshll.u32 %s221, 4
      %s232 = int_to_ptr.vmem [resolvable:$true] %s231
      %234 = dma.hbm_to_vmem [thread:$0]  %s230, 16, %s232, [#allocation4]
      %s235 = scalar_lea.hbm %s1, %s213
      %s236 = scalar_lea.vmem [#allocation2], 9
      // Predicated region
      $region62: #{tpu_custom_call.1} parent=24 // pred_check
        _
      $region63: #{tpu_custom_call.1} parent=24 // pred_check_branch
        %238 = sbr.rel target = $region65
      $region64: #{tpu_custom_call.1} parent=24 // pred_region
        %239 = sst [smem:[#allocation15]] [#allocation34]
        %240 = sst [smem:[#allocation16]] [#allocation33]
      $region65: #{tpu_custom_call.1} parent=24 // pred_fallthru
        _
      %242 = shalt.err (0)
      %s244 = sshll.u32 %s235, 4
      %s245 = int_to_ptr.hbm [resolvable:$true] %s244
      %s246 = sshll.u32 %s236, 4
      %s247 = int_to_ptr.vmem [resolvable:$true] %s246
      %249 = dma.hbm_to_vmem [thread:$0]  %s245, 16, %s247, %s85
      %s250 = scalar_lea.hbm %s1, %s214
      %s251 = scalar_lea.vmem [#allocation2], 10
      // Predicated region
      $region66: #{tpu_custom_call.1} parent=24 // pred_check
        _
      $region67: #{tpu_custom_call.1} parent=24 // pred_check_branch
        %253 = sbr.rel target = $region69
      $region68: #{tpu_custom_call.1} parent=24 // pred_region
        %254 = sst [smem:[#allocation15]] [#allocation36]
        %255 = sst [smem:[#allocation16]] [#allocation35]
      $region69: #{tpu_custom_call.1} parent=24 // pred_fallthru
        _
      %257 = shalt.err (0)
      %s259 = sshll.u32 %s250, 4
      %s260 = int_to_ptr.hbm [resolvable:$true] %s259
      %s261 = sshll.u32 %s251, 4
      %s262 = int_to_ptr.vmem [resolvable:$true] %s261
      %264 = dma.hbm_to_vmem [thread:$0]  %s260, 16, %s262, %s101
      %s265 = scalar_lea.hbm %s1, %s215
      %s266 = scalar_lea.vmem [#allocation2], 11
      // Predicated region
      $region70: #{tpu_custom_call.1} parent=24 // pred_check
        _
      $region71: #{tpu_custom_call.1} parent=24 // pred_check_branch
        %268 = sbr.rel target = $region73
      $region72: #{tpu_custom_call.1} parent=24 // pred_region
        %269 = sst [smem:[#allocation15]] [#allocation38]
        %270 = sst [smem:[#allocation16]] [#allocation37]
      $region73: #{tpu_custom_call.1} parent=24 // pred_fallthru
        _
      %272 = shalt.err (0)
      %s274 = sshll.u32 %s265, 4
      %s275 = int_to_ptr.hbm [resolvable:$true] %s274
      %s276 = sshll.u32 %s266, 4
      %s277 = int_to_ptr.vmem [resolvable:$true] %s276
      %279 = dma.hbm_to_vmem [thread:$0]  %s275, 16, %s277, %s117
      %s280 = scalar_lea.hbm %s1, %s216
      %s281 = scalar_lea.vmem [#allocation2], 12
      // Predicated region
      $region74: #{tpu_custom_call.1} parent=24 // pred_check
        _
      $region75: #{tpu_custom_call.1} parent=24 // pred_check_branch
        %283 = sbr.rel target = $region77
      $region76: #{tpu_custom_call.1} parent=24 // pred_region
        %284 = sst [smem:[#allocation15]] [#allocation40]
        %285 = sst [smem:[#allocation16]] [#allocation39]
      $region77: #{tpu_custom_call.1} parent=24 // pred_fallthru
        _
      %287 = shalt.err (0)
      %s289 = sshll.u32 %s280, 4
      %s290 = int_to_ptr.hbm [resolvable:$true] %s289
      %s291 = sshll.u32 %s281, 4
      %s292 = int_to_ptr.vmem [resolvable:$true] %s291
      %294 = dma.hbm_to_vmem [thread:$0]  %s290, 16, %s292, %s133
      %s295 = scalar_lea.hbm %s1, %s217
      %s296 = scalar_lea.vmem [#allocation2], 13
      // Predicated region
      $region78: #{tpu_custom_call.1} parent=24 // pred_check
        _
      $region79: #{tpu_custom_call.1} parent=24 // pred_check_branch
        %298 = sbr.rel target = $region81
      $region80: #{tpu_custom_call.1} parent=24 // pred_region
        %299 = sst [smem:[#allocation15]] [#allocation42]
        %300 = sst [smem:[#allocation16]] [#allocation41]
      $region81: #{tpu_custom_call.1} parent=24 // pred_fallthru
        _
      %302 = shalt.err (0)
      %s304 = sshll.u32 %s295, 4
      %s305 = int_to_ptr.hbm [resolvable:$true] %s304
      %s306 = sshll.u32 %s296, 4
      %s307 = int_to_ptr.vmem [resolvable:$true] %s306
      %309 = dma.hbm_to_vmem [thread:$0]  %s305, 16, %s307, %s149
      %s310 = scalar_lea.hbm %s1, %s218
      %s311 = scalar_lea.vmem [#allocation2], 14
      // Predicated region
      $region82: #{tpu_custom_call.1} parent=24 // pred_check
        _
      $region83: #{tpu_custom_call.1} parent=24 // pred_check_branch
        %313 = sbr.rel target = $region85
      $region84: #{tpu_custom_call.1} parent=24 // pred_region
        %314 = sst [smem:[#allocation15]] [#allocation44]
        %315 = sst [smem:[#allocation16]] [#allocation43]
      $region85: #{tpu_custom_call.1} parent=24 // pred_fallthru
        _
      %317 = shalt.err (0)
      %s319 = sshll.u32 %s310, 4
      %s320 = int_to_ptr.hbm [resolvable:$true] %s319
      %s321 = sshll.u32 %s311, 4
      %s322 = int_to_ptr.vmem [resolvable:$true] %s321
      %324 = dma.hbm_to_vmem [thread:$0]  %s320, 16, %s322, %s165
      %s325 = scalar_lea.hbm %s1, %s219
      %s326 = scalar_lea.vmem [#allocation2], 15
      // Predicated region
      $region86: #{tpu_custom_call.1} parent=24 // pred_check
        _
      $region87: #{tpu_custom_call.1} parent=24 // pred_check_branch
        %328 = sbr.rel target = $region89
      $region88: #{tpu_custom_call.1} parent=24 // pred_region
        %329 = sst [smem:[#allocation15]] [#allocation46]
        %330 = sst [smem:[#allocation16]] [#allocation45]
      $region89: #{tpu_custom_call.1} parent=24 // pred_fallthru
        _
      %332 = shalt.err (0)
      %s334 = sshll.u32 %s325, 4
      %s335 = int_to_ptr.hbm [resolvable:$true] %s334
      %s336 = sshll.u32 %s326, 4
      %s337 = int_to_ptr.vmem [resolvable:$true] %s336
      %339 = dma.hbm_to_vmem [thread:$0]  %s335, 16, %s337, %s181
      %s340 = sshll.u32 %s195, 4
      %341 = dma.done [#allocation4], %s340
      %s342 = sshll.u32 %s195, 4
      %343 = dma.done %s85, %s342
      %s344 = sshll.u32 %s195, 4
      %345 = dma.done %s101, %s344
      %s346 = sshll.u32 %s195, 4
      %347 = dma.done %s117, %s346
      %s348 = sshll.u32 %s195, 4
      %349 = dma.done %s133, %s348
      %s350 = sshll.u32 %s195, 4
      %351 = dma.done %s149, %s350
      %s352 = sshll.u32 %s195, 4
      %353 = dma.done %s165, %s352
      %s354 = sshll.u32 %s195, 4
      %355 = dma.done %s181, %s354
      %v356 = vld [vmem:[#allocation2] sm:$0xff]
      %v357 = vld [vmem:[#allocation7] sm:$0xff]
      %v358 = vadd.f32 %v356, %v357
      %359 = vst [vmem:[#allocation2] sm:$0xff] %v358
      %v360 = vld [vmem:[#allocation2 + $0x8] sm:$0xff]
      %v361 = vld [vmem:[#allocation7] sm:$0xff]
      %v362 = vadd.f32 %v360, %v361
      %363 = vst [vmem:[#allocation2 + $0x8] sm:$0xff] %v362
      %v364 = vld [vmem:[#allocation2] sm:$0xff]
      %v365 = vld [vmem:[#allocation2 + $0x8] sm:$0xff]
      %v366 = vpack.c.bf16 %v364, %v364
      %v367 = vpack.c.bf16 %v365, %v365
      %368 = vst [vmem:[#allocation3] sm:$0xf] %v366
      %369 = vst [vmem:[#allocation3 + $0x4] sm:$0xf] %v367
    $region25: #{tpu_custom_call.1} parent=1 // pred_fallthru
      _
    %s370 = smul.u32 0, 16
    %s371 = sshra.s32 %s370, 3
    %s372 = sand.u32 %s370, 7
    %s373 = smul.addr %s371, 4
    %s374 = scalar_lea.vmem [#allocation3], %s373
    %v375 = vld [vmem:[%s374] sm:$0xf]
    %v376 = vld [vmem:[%s374 + $0x4] sm:$0xf]
    %v377 = vld [vmem:[#allocation10] sm:$0xff]
    %v378 = vld [vmem:[#allocation10 + $0x8] sm:$0xff]
    %v379 = vld [vmem:[#allocation10 + $0x10] sm:$0xff]
    %v380 = vld [vmem:[#allocation10 + $0x18] sm:$0xff]
    %v381 = vld [vmem:[#allocation10 + $0x20] sm:$0xff]
    %v382 = vld [vmem:[#allocation10 + $0x28] sm:$0xff]
    %v383 = vld [vmem:[#allocation10 + $0x30] sm:$0xff]
    %v384 = vld [vmem:[#allocation10 + $0x38] sm:$0xff]
    %v385 = vld [vmem:[#allocation10 + $0x40] sm:$0xff]
    %v386 = vld [vmem:[#allocation10 + $0x48] sm:$0xff]
    %v387 = vld [vmem:[#allocation10 + $0x50] sm:$0xff]
    %v388 = vld [vmem:[#allocation10 + $0x58] sm:$0xff]
    %v389 = vld [vmem:[#allocation10 + $0x60] sm:$0xff]
    %v390 = vld [vmem:[#allocation10 + $0x68] sm:$0xff]
    %v391 = vld [vmem:[#allocation10 + $0x70] sm:$0xff]
    %v392 = vld [vmem:[#allocation10 + $0x78] sm:$0xff]
    %v393 = vld [vmem:[%s4] sm:$0x3]
    %v395 = vperm.slane %v393, 0
    %v396 = vperm.slane %v393, 1
    %v401 = vunpack.c.l.b16 %v375
    %v402 = vunpack.c.l.b16 %v376
    %v403 = vpack.c.b16 %v402, %v401
    %v421 = vunpack.c.l.b16 %v377
    %v422 = vunpack.c.h.b16 %v377
    %v423 = vunpack.c.l.b16 %v378
    %v424 = vunpack.c.h.b16 %v378
    %v425 = vunpack.c.l.b16 %v379
    %v426 = vunpack.c.h.b16 %v379
    %v427 = vunpack.c.l.b16 %v380
    %v428 = vunpack.c.h.b16 %v380
    %v429 = vunpack.c.l.b16 %v381
    %v430 = vunpack.c.h.b16 %v381
    %v431 = vunpack.c.l.b16 %v382
    %v432 = vunpack.c.h.b16 %v382
    %v433 = vunpack.c.l.b16 %v383
    %v434 = vunpack.c.h.b16 %v383
    %v435 = vunpack.c.l.b16 %v384
    %v436 = vunpack.c.h.b16 %v384
    %v437 = vunpack.c.l.b16 %v385
    %v438 = vunpack.c.h.b16 %v385
    %v439 = vunpack.c.l.b16 %v386
    %v440 = vunpack.c.h.b16 %v386
    %v441 = vunpack.c.l.b16 %v387
    %v442 = vunpack.c.h.b16 %v387
    %v443 = vunpack.c.l.b16 %v388
    %v444 = vunpack.c.h.b16 %v388
    %v445 = vunpack.c.l.b16 %v389
    %v446 = vunpack.c.h.b16 %v389
    %v447 = vunpack.c.l.b16 %v390
    %v448 = vunpack.c.h.b16 %v390
    %v449 = vunpack.c.l.b16 %v391
    %v450 = vunpack.c.h.b16 %v391
    %v451 = vunpack.c.l.b16 %v392
    %v452 = vunpack.c.h.b16 %v392
    %v453 = vpack.c.b16 %v423, %v421
    %v454 = vpack.c.b16 %v424, %v422
    %v455 = vpack.c.b16 %v427, %v425
    %v456 = vpack.c.b16 %v428, %v426
    %v457 = vpack.c.b16 %v431, %v429
    %v458 = vpack.c.b16 %v432, %v430
    %v459 = vpack.c.b16 %v435, %v433
    %v460 = vpack.c.b16 %v436, %v434
    %v461 = vpack.c.b16 %v439, %v437
    %v462 = vpack.c.b16 %v440, %v438
    %v463 = vpack.c.b16 %v443, %v441
    %v464 = vpack.c.b16 %v444, %v442
    %v465 = vpack.c.b16 %v447, %v445
    %v466 = vpack.c.b16 %v448, %v446
    %v467 = vpack.c.b16 %v451, %v449
    %v468 = vpack.c.b16 %v452, %v450
    %485 = vmatpush.bf16.msra.mxu0 %v467
    %486 = vmatpush.bf16.msra.mxu0 %v465
    %487 = vmatpush.bf16.msra.mxu0 %v463
    %488 = vmatpush.bf16.msra.mxu0 %v461
    %489 = vmatpush.bf16.msra.mxu0 %v459
    %490 = vmatpush.bf16.msra.mxu0 %v457
    %491 = vmatpush.bf16.msra.mxu0 %v455
    %492 = vmatpush.bf16.msra.mxu0 %v453
    %493 = vmatmul.bf16.gmra.mxu0 %v403
    %v494 = vpop.f32.mrf.mxu0
    %v495 = vadd.f32 %v395, %v494
    %v496 = vpop.f32.mrf.mxu0
    %v497 = vadd.f32 %v395, %v496
    %498 = vdwg.mxu0
    %499 = vmatpush.bf16.msra.mxu0 %v468
    %500 = vmatpush.bf16.msra.mxu0 %v466
    %501 = vmatpush.bf16.msra.mxu0 %v464
    %502 = vmatpush.bf16.msra.mxu0 %v462
    %503 = vmatpush.bf16.msra.mxu0 %v460
    %504 = vmatpush.bf16.msra.mxu0 %v458
    %505 = vmatpush.bf16.msra.mxu0 %v456
    %506 = vmatpush.bf16.msra.mxu0 %v454
    %507 = vmatmul.bf16.gmra.mxu0 %v403
    %v508 = vpop.f32.mrf.mxu0
    %v509 = vadd.f32 %v396, %v508
    %v510 = vpop.f32.mrf.mxu0
    %v511 = vadd.f32 %v396, %v510
    %512 = vdwg.mxu0
    %513 = vst [vmem:[#allocation12] sm:$0xff] %v495
    %514 = vst [vmem:[#allocation12 + $0x8] sm:$0xff] %v509
    %515 = vst [vmem:[#allocation12 + $0x10] sm:$0xff] %v497
    %516 = vst [vmem:[#allocation12 + $0x18] sm:$0xff] %v511
    // Predicated region
    $region90: #{tpu_custom_call.1} parent=1 // pred_check
      _
    $region91: #{tpu_custom_call.1} parent=1 // pred_check_branch
      %518 = sbr.rel (0) target = $region93
    $region92: #{tpu_custom_call.1} parent=1 // pred_region
      %520 = vsyncadd [#allocation9], 0
      %s521 = sshll.u32 [#allocation12], 4
      %s522 = int_to_ptr.vmem [resolvable:$true] %s521
      %s523 = sshll.u32 %s5, 4
      %s524 = int_to_ptr.hbm [resolvable:$true] %s523
      %529 = dma.vmem_to_hbm [thread:$0]  %s522, 512, %s524, [#allocation9], 256, 256, 16
    $region93: #{tpu_custom_call.1} parent=1 // pred_fallthru
      _
    // Predicated region
    $region94: #{tpu_custom_call.1} parent=1 // pred_check
      _
    $region95: #{tpu_custom_call.1} parent=1 // pred_check_branch
      %531 = sbr.rel (0) target = $region97
    $region96: #{tpu_custom_call.1} parent=1 // pred_region
      %533 = dma.done [#allocation9], 512
    $region97: #{tpu_custom_call.1} parent=1 // pred_fallthru
      _
    %534 = vsyncpa [#allocation8], 1
    %535 = vsyncpa [#allocation11], 1
    %536 = vsyncpa [#allocation9], 1
  %537 = vsyncmov [#allocation4]
  %s538 = vpop.sfrf %537
  %p539 = scmp.eq.s32.totalorder %s538, 0
  %p540 = pneg %p539
  %542 = shalt.err (%p540)
  %s543 = scalar_lea.sflag [#allocation4], 1
  %544 = vsyncmov %s543
  %s545 = vpop.sfrf %544
  %p546 = scmp.eq.s32.totalorder %s545, 0
  %p547 = pneg %p546
  %549 = shalt.err (%p547)
  %s550 = scalar_lea.sflag [#allocation4], 2
  %551 = vsyncmov %s550
  %s552 = vpop.sfrf %551
  %p553 = scmp.eq.s32.totalorder %s552, 0
  %p554 = pneg %p553
  %556 = shalt.err (%p554)
  %s557 = scalar_lea.sflag [#allocation4], 3
  %558 = vsyncmov %s557
  %s559 = vpop.sfrf %558
  %p560 = scmp.eq.s32.totalorder %s559, 0
  %p561 = pneg %p560
  %563 = shalt.err (%p561)
  %s564 = scalar_lea.sflag [#allocation4], 4
  %565 = vsyncmov %s564
  %s566 = vpop.sfrf %565
  %p567 = scmp.eq.s32.totalorder %s566, 0
  %p568 = pneg %p567
  %570 = shalt.err (%p568)
  %s571 = scalar_lea.sflag [#allocation4], 5
  %572 = vsyncmov %s571
  %s573 = vpop.sfrf %572
  %p574 = scmp.eq.s32.totalorder %s573, 0
  %p575 = pneg %p574
  %577 = shalt.err (%p575)
  %s578 = scalar_lea.sflag [#allocation4], 6
  %579 = vsyncmov %s578
  %s580 = vpop.sfrf %579
  %p581 = scmp.eq.s32.totalorder %s580, 0
  %p582 = pneg %p581
  %584 = shalt.err (%p582)
  %s585 = scalar_lea.sflag [#allocation4], 7
  %586 = vsyncmov %s585
  %s587 = vpop.sfrf %586
  %p588 = scmp.eq.s32.totalorder %s587, 0
  %p589 = pneg %p588
  %591 = shalt.err (%p589)

</llo_original>
